<compile_context>
chip_gen: v6e
topology: v6e:2x2x1
jax: 0.10.0
libtpu: 0.0.40
codegen_flags: <defaults>
</compile_context>

<pallas_src>
import functools

import jax
import jax.numpy as jnp
import numpy as np
from jax.experimental import pallas as pl
from jax.experimental.pallas import tpu as pltpu


# ---------------------------------------------------------------------------
# Kernel: per (batch, T-tile) grid step.
#   refs: x (C, tile_t)   zt (K, z_dim)   bn scale/shift (C, 1)
#         hyper-net params (pre-transposed, position-major)   eq conv params
#   out:  (O, tile_t)
#   scratch: w_s (K, O, C), b_s (K, O, 1)  -- per-position conv weights/biases for this batch
# ---------------------------------------------------------------------------
def _hyper_conv_blk_kernel(x_ref, zt_ref, scale_ref, shift_ref,
                           w1w_ref, b1w_ref, w1b_ref, b1b_ref,
                           w2w_ref, b2w_ref, w2b_ref, b2b_ref,
                           eqw_ref, eqb_ref,
                           o_ref, w_s, b_s, *, rep):
    f32 = jnp.float32
    t = pl.program_id(1)
    K, O, C = w_s.shape

    # --- once per batch element: both hyper-net regressors for all K positions (MXU) ---
    @pl.when(t == 0)
    def _():
        zt = zt_ref[...]                                                        # (K, z_dim)
        hw = jnp.tanh(jnp.dot(zt, w1w_ref[...], preferred_element_type=f32) + b1w_ref[...])
        hb = jnp.tanh(jnp.dot(zt, w1b_ref[...], preferred_element_type=f32) + b1b_ref[...])
        # weight head (ks replication already folded in the wrapper), flattened as (o, c)
        wf = jnp.dot(hw, w2w_ref[...], preferred_element_type=f32) + b2w_ref[...]   # (K, O*C)
        w_s[...] = wf.reshape(K, O, C)
        bias = jnp.dot(hb, w2b_ref[...], preferred_element_type=f32) + b2b_ref[...]  # (K, O)
        b_s[...] = bias[:, :, None]

    x = x_ref[...]                                                              # (C, tile_t)
    tile_t = x.shape[-1]
    tile_k = tile_t // rep                                                      # positions in tile

    # BatchNorm1d (batch stats hoisted to the wrapper): per-channel affine, pure VPU.
    xn = x * scale_ref[...] + shift_ref[...]                                    # (C, tile_t)

    # equalize_channels residual on the ORIGINAL x: one lane-dense MXU matmul per tile.
    eq = jnp.dot(eqw_ref[...], x, preferred_element_type=f32) + eqb_ref[...]    # (O, tile_t)

    # Hyper-conv apply: position n owns the `rep` contiguous columns [n*rep, (n+1)*rep), so
    # no per-sample weight expansion is needed -- a small (O, C) @ (C, rep) MXU matmul per
    # position.  tile_k is a small static count; stores stay lane-dense over `rep` columns.
    k0 = t * tile_k
    for n in range(tile_k):                                                     # static unroll
        lo = n * rep
        w_n = w_s[k0 + n]                                                       # (O, C)
        b_n = b_s[k0 + n]                                                       # (O, 1)
        y_n = jnp.dot(w_n, xn[:, lo:lo + rep], preferred_element_type=f32) + b_n
        y_n = jnp.maximum(y_n, 0.0)                                             # ReLU activation
        o_ref[:, pl.ds(lo, rep)] = (eq[:, lo:lo + rep] + y_n).astype(o_ref.dtype)


def _choose_tile_t(T, L, cap=2048):
    """Largest T-tile that divides T, is a multiple of L, and is lane-dense (mult. of 128)."""
    valid = [d for d in range(L, T + 1, L)
             if T % d == 0 and (d % 128 == 0 or d == T)]
    capped = [d for d in valid if d <= cap]
    return max(capped) if capped else min(valid)


# ---------------------------------------------------------------------------
# Wrapper: parameter packing (tiny, one-time) + BN stat hoisting, then one pallas_call.
# ---------------------------------------------------------------------------
def hyper_conv_blk(x, z, params, *, tile_t=None):
    B, C, T = x.shape
    _, z_dim, K = z.shape
    assert T % K == 0
    L = T // K
    ks = params["ks"]
    O = params["eq_w"].shape[0]
    H = params["w_w1"].shape[0]
    eps = 1e-5
    f32 = jnp.float32

    if tile_t is None:
        # size against VMEM: smaller on v7x (64 MiB physical), larger OK on v5e/v6e.
        tile_t = _choose_tile_t(T, L)
    assert T % tile_t == 0 and tile_t % L == 0
    n_t = T // tile_t

    # --- BatchNorm1d training-mode batch stats (biased var), hoisted out of the kernel ---
    mean = jnp.mean(x, axis=(0, 2))
    var = jnp.var(x, axis=(0, 2))                                   # ddof=0, matches BN
    scale = jax.lax.rsqrt(var + eps) * params["bn_gamma"]
    bn_scale = scale.reshape(C, 1).astype(f32)
    bn_shift = (params["bn_beta"] - mean * scale).reshape(C, 1).astype(f32)

    # --- position-major z (tiny: B*K*z_dim elements; x / out are NOT transposed) ---
    zt = jnp.transpose(z, (0, 2, 1)).astype(f32)                    # (B, K, z_dim)

    # --- hyper-net parameters, transposed for position-major matmuls ---
    w1w = params["w_w1"][:, :, 0].T                                 # (z_dim, H)
    b1w = params["w_b1"].reshape(1, H)
    w1b = params["b_w1"][:, :, 0].T                                 # (z_dim, H)
    b1b = params["b_b1"].reshape(1, H)

    # weight-regressor layer 2: fold the kernel-size replication of x (sum over the ks
    # replica slices) and reorder the flattening from (c, o) to (o, c) for the kernel.
    w2w_eff = params["w_w2"][:, :, 0].reshape(ks, C * O, H).sum(0)  # (C*O, H), index c*O+o
    b2w_eff = params["w_b2"].reshape(ks, C * O).sum(0)              # (C*O,)
    w2w = w2w_eff.reshape(C, O, H).transpose(1, 0, 2).reshape(O * C, H).T   # (H, O*C)
    b2w = b2w_eff.reshape(C, O).T.reshape(1, O * C)
    w2b = params["b_w2"][:, :, 0].T                                 # (H, O)
    b2b = params["b_b2"].reshape(1, O)

    # equalize_channels: Conv1d(in_ch, out_ch, 1)
    # (if in_ch == out_ch the PyTorch block skips it; pass eq_w=I, eq_b=0 in that case)
    eqw = params["eq_w"][:, :, 0]                                   # (O, C)
    eqb = params["eq_b"].reshape(O, 1)

    def param_spec(shape):
        return pl.BlockSpec(shape, lambda b, t: (0, 0))

    in_specs = [
        pl.BlockSpec((None, C, tile_t), lambda b, t: (b, 0, t)),    # x  (B, C, T)
        pl.BlockSpec((None, K, z_dim), lambda b, t: (b, 0, 0)),     # zt (B, K, z_dim)
        param_spec((C, 1)), param_spec((C, 1)),                     # bn scale / shift
        param_spec((z_dim, H)), param_spec((1, H)),                 # weight-net layer 1
        param_spec((z_dim, H)), param_spec((1, H)),                 # bias-net layer 1
        param_spec((H, O * C)), param_spec((1, O * C)),             # weight-net layer 2
        param_spec((H, O)), param_spec((1, O)),                     # bias-net layer 2
        param_spec((O, C)), param_spec((O, 1)),                     # equalize_channels
    ]
    out_spec = pl.BlockSpec((None, O, tile_t), lambda b, t: (b, 0, t))

    kernel = functools.partial(_hyper_conv_blk_kernel, rep=L)
    out = pl.pallas_call(
        kernel,
        out_shape=jax.ShapeDtypeStruct((B, O, T), f32),
        grid=(B, n_t),
        in_specs=in_specs,
        out_specs=out_spec,
        scratch_shapes=[pltpu.VMEM((K, O, C), f32),                 # per-position conv weights
                        pltpu.VMEM((K, O, 1), f32)],                # per-position conv biases
        compiler_params=pltpu.CompilerParams(
            dimension_semantics=("parallel", "arbitrary"),          # megacore splits batches
            vmem_limit_bytes=64 * 1024 * 1024),
    )(x.astype(f32), zt, bn_scale, bn_shift,
      w1w, b1w, w1b, b1b, w2w, b2w, w2b, b2b, eqw, eqb)
    return out                                                      # (B, out_ch, T)


# ---------------------------------------------------------------------------
# Deterministic parameter init (shapes from the module __init__).
# ---------------------------------------------------------------------------
def init_params(key, in_ch, out_ch, z_dim, ks, hidden=64):
    keys = jax.random.split(key, 8)
    s = 0.1
    p = {"ks": ks}
    # HyperConv.weight_model: Conv1d(z_dim, 64, 1) [zero-initialized], Tanh,
    #                         Conv1d(64, in_ch*out_ch*ks, 1)
    p["w_w1"] = jnp.zeros((hidden, z_dim, 1), jnp.float32)
    p["w_b1"] = jnp.zeros((hidden,), jnp.float32)
    p["w_w2"] = s * jax.random.normal(keys[0], (in_ch * out_ch * ks, hidden, 1), jnp.float32)
    p["w_b2"] = s * jax.random.normal(keys[1], (in_ch * out_ch * ks,), jnp.float32)
    # HyperConv.bias_model: Conv1d(z_dim, 64, 1), Tanh, Conv1d(64, out_ch, 1)
    p["b_w1"] = s * jax.random.normal(keys[2], (hidden, z_dim, 1), jnp.float32)
    p["b_b1"] = s * jax.random.normal(keys[3], (hidden,), jnp.float32)
    p["b_w2"] = s * jax.random.normal(keys[4], (out_ch, hidden, 1), jnp.float32)
    p["b_b2"] = s * jax.random.normal(keys[5], (out_ch,), jnp.float32)
    # BatchNorm1d(in_ch) affine (default init)
    p["bn_gamma"] = jnp.ones((in_ch,), jnp.float32)
    p["bn_beta"] = jnp.zeros((in_ch,), jnp.float32)
    # equalize_channels: Conv1d(in_ch, out_ch, 1)  (in_ch != out_ch in the test)
    p["eq_w"] = s * jax.random.normal(keys[6], (out_ch, in_ch, 1), jnp.float32)
    p["eq_b"] = s * jax.random.normal(keys[7], (out_ch,), jnp.float32)
    return p


# ---------------------------------------------------------------------------
# Pure-JAX reference (literal translation of the PyTorch forward) for validation.
# ---------------------------------------------------------------------------
def reference(x, z, params):
    B, C, T = x.shape
    _, z_dim, K = z.shape
    ks = params["ks"]
    O = params["eq_w"].shape[0]
    eps = 1e-5
    mean = x.mean(axis=(0, 2), keepdims=True)
    var = ((x - mean) ** 2).mean(axis=(0, 2), keepdims=True)
    xn = (x - mean) / jnp.sqrt(var + eps)
    xn = xn * params["bn_gamma"][None, :, None] + params["bn_beta"][None, :, None]

    xc = jnp.concatenate([xn] * ks, axis=1)                               # (B, C*ks, T)
    xc = jnp.transpose(xc, (0, 2, 1)).reshape(B * K, T // K, C * ks)

    hw = jnp.tanh(jnp.einsum('hz,bzt->bht', params["w_w1"][:, :, 0], z)
                  + params["w_b1"][None, :, None])
    wout = jnp.einsum('ch,bht->bct', params["w_w2"][:, :, 0], hw) + params["w_b2"][None, :, None]
    weight = wout.reshape(B, C * ks, O, K).transpose(0, 3, 1, 2).reshape(B * K, C * ks, O)

    hb = jnp.tanh(jnp.einsum('hz,bzt->bht', params["b_w1"][:, :, 0], z)
                  + params["b_b1"][None, :, None])
    bout = jnp.einsum('oh,bht->bot', params["b_w2"][:, :, 0], hb) + params["b_b2"][None, :, None]
    bias = bout.transpose(0, 2, 1).reshape(B * K, O)

    y = jnp.einsum('nlc,nco->nlo', xc, weight) + bias[:, None, :]
    y = y.reshape(B, -1, O).transpose(0, 2, 1)                            # (B, O, T)
    y = jnp.maximum(y, 0.0)
    xeq = jnp.einsum('oc,bct->bot', params["eq_w"][:, :, 0], x) + params["eq_b"][None, :, None]
    return xeq + y


if __name__ == "__main__":
    B, in_ch, out_ch, z_dim, ks = 2, 4, 8, 6, 3
    T, K = 512, 4                          # L = T//K = 128 samples per conditioning position

    key = jax.random.PRNGKey(0)
    kx, kz, kp = jax.random.split(key, 3)
    x = jax.random.normal(kx, (B, in_ch, T), jnp.float32)
    z = jax.random.normal(kz, (B, z_dim, K), jnp.float32)
    params = init_params(kp, in_ch, out_ch, z_dim, ks)

    # tile_t=256 -> grid (B, 2): exercises the T-tiling, the per-batch pl.when(t == 0)
    # hyper-net scratch fill, and lane-dense 128-multiple stores.
    out = hyper_conv_blk(x, z, params, tile_t=256)
    out = jax.block_until_ready(out)
    assert out.shape == (B, out_ch, T)

    ref = reference(x, z, params)
    np.testing.assert_allclose(np.asarray(out), np.asarray(ref), rtol=1e-4, atol=1e-4)
    print("KERNEL_OK")
</pallas_src>

<mosaic_0001>
module attributes {stable_mosaic.version = 11 : i64} {
  func.func @_hyper_conv_blk_kernel(%arg0: i32, %arg1: i32, %arg2: memref<1x4x256xf32, #tpu.memory_space<vmem>>, %arg3: memref<1x4x6xf32, #tpu.memory_space<vmem>>, %arg4: memref<4x1xf32, #tpu.memory_space<vmem>>, %arg5: memref<4x1xf32, #tpu.memory_space<vmem>>, %arg6: memref<6x64xf32, #tpu.memory_space<vmem>>, %arg7: memref<1x64xf32, #tpu.memory_space<vmem>>, %arg8: memref<6x64xf32, #tpu.memory_space<vmem>>, %arg9: memref<1x64xf32, #tpu.memory_space<vmem>>, %arg10: memref<64x32xf32, #tpu.memory_space<vmem>>, %arg11: memref<1x32xf32, #tpu.memory_space<vmem>>, %arg12: memref<64x8xf32, #tpu.memory_space<vmem>>, %arg13: memref<1x8xf32, #tpu.memory_space<vmem>>, %arg14: memref<8x4xf32, #tpu.memory_space<vmem>>, %arg15: memref<8x1xf32, #tpu.memory_space<vmem>>, %arg16: memref<1x8x256xf32, #tpu.memory_space<vmem>>, %arg17: memref<4x8x4xf32, #tpu.memory_space<vmem>>, %arg18: memref<4x8x1xf32, #tpu.memory_space<vmem>>) attributes {dimension_semantics = [#tpu.dimension_semantics<parallel>, #tpu.dimension_semantics<arbitrary>], iteration_bounds = array<i64: 2, 2>, scalar_prefetch = 0 : i64, scratch_operands = 2 : i64, tpu.core_type = #tpu.core_type<tc>, window_params = [{transform_indices = @transform_0, window_bounds = array<i64: 1, 4, 256>}, {transform_indices = @transform_1, window_bounds = array<i64: 1, 4, 6>}, {pipeline_mode = #tpu.pipeline_mode<synchronous>, transform_indices = @transform_2, window_bounds = array<i64: 4, 1>}, {pipeline_mode = #tpu.pipeline_mode<synchronous>, transform_indices = @transform_3, window_bounds = array<i64: 4, 1>}, {pipeline_mode = #tpu.pipeline_mode<synchronous>, transform_indices = @transform_4, window_bounds = array<i64: 6, 64>}, {pipeline_mode = #tpu.pipeline_mode<synchronous>, transform_indices = @transform_5, window_bounds = array<i64: 1, 64>}, {pipeline_mode = #tpu.pipeline_mode<synchronous>, transform_indices = @transform_6, window_bounds = array<i64: 6, 64>}, {pipeline_mode = #tpu.pipeline_mode<synchronous>, transform_indices = @transform_7, window_bounds = array<i64: 1, 64>}, {pipeline_mode = #tpu.pipeline_mode<synchronous>, transform_indices = @transform_8, window_bounds = array<i64: 64, 32>}, {pipeline_mode = #tpu.pipeline_mode<synchronous>, transform_indices = @transform_9, window_bounds = array<i64: 1, 32>}, {pipeline_mode = #tpu.pipeline_mode<synchronous>, transform_indices = @transform_10, window_bounds = array<i64: 64, 8>}, {pipeline_mode = #tpu.pipeline_mode<synchronous>, transform_indices = @transform_11, window_bounds = array<i64: 1, 8>}, {pipeline_mode = #tpu.pipeline_mode<synchronous>, transform_indices = @transform_12, window_bounds = array<i64: 8, 4>}, {pipeline_mode = #tpu.pipeline_mode<synchronous>, transform_indices = @transform_13, window_bounds = array<i64: 8, 1>}, {transform_indices = @transform_14, window_bounds = array<i64: 1, 8, 256>}]} {
    %c0_i32 = arith.constant 0 : i32
    %0 = arith.cmpi eq, %arg1, %c0_i32 : i32
    %1 = arith.extui %0 : i1 to i32
    %c0_i32_0 = arith.constant 0 : i32
    %2 = arith.cmpi ne, %1, %c0_i32_0 : i32
    scf.if %2 {
      %c0_31 = arith.constant 0 : index
      %c0_32 = arith.constant 0 : index
      %c0_33 = arith.constant 0 : index
      %55 = vector.load %arg3[%c0_31, %c0_32, %c0_33] : memref<1x4x6xf32, #tpu.memory_space<vmem>>, vector<1x4x6xf32>
      %56 = vector.shape_cast %55 : vector<1x4x6xf32> to vector<4x6xf32>
      %c0_34 = arith.constant 0 : index
      %c0_35 = arith.constant 0 : index
      %57 = vector.load %arg6[%c0_34, %c0_35] : memref<6x64xf32, #tpu.memory_space<vmem>>, vector<6x64xf32>
      %cst_36 = arith.constant dense<0.000000e+00> : vector<4x64xf32>
      %58 = tpu.matmul %56, %57, %cst_36 {dimension_numbers = #tpu.dot_dimension_numbers<[1], [0], [0], [1], [0, 0, 1, 1], [], []>} : vector<4x6xf32>, vector<6x64xf32>, vector<4x64xf32> -> vector<4x64xf32>
      %c0_37 = arith.constant 0 : index
      %c0_38 = arith.constant 0 : index
      %59 = vector.load %arg7[%c0_37, %c0_38] : memref<1x64xf32, #tpu.memory_space<vmem>>, vector<1x64xf32>
      %60 = vector.broadcast %59 : vector<1x64xf32> to vector<4x64xf32>
      %61 = arith.addf %58, %60 : vector<4x64xf32>
      %62 = math.tanh %61 : vector<4x64xf32>
      %c0_39 = arith.constant 0 : index
      %c0_40 = arith.constant 0 : index
      %63 = vector.load %arg8[%c0_39, %c0_40] : memref<6x64xf32, #tpu.memory_space<vmem>>, vector<6x64xf32>
      %cst_41 = arith.constant dense<0.000000e+00> : vector<4x64xf32>
      %64 = tpu.matmul %56, %63, %cst_41 {dimension_numbers = #tpu.dot_dimension_numbers<[1], [0], [0], [1], [0, 0, 1, 1], [], []>} : vector<4x6xf32>, vector<6x64xf32>, vector<4x64xf32> -> vector<4x64xf32>
      %c0_42 = arith.constant 0 : index
      %c0_43 = arith.constant 0 : index
      %65 = vector.load %arg9[%c0_42, %c0_43] : memref<1x64xf32, #tpu.memory_space<vmem>>, vector<1x64xf32>
      %66 = vector.broadcast %65 : vector<1x64xf32> to vector<4x64xf32>
      %67 = arith.addf %64, %66 : vector<4x64xf32>
      %68 = math.tanh %67 : vector<4x64xf32>
      %c0_44 = arith.constant 0 : index
      %c0_45 = arith.constant 0 : index
      %69 = vector.load %arg10[%c0_44, %c0_45] : memref<64x32xf32, #tpu.memory_space<vmem>>, vector<64x32xf32>
      %cst_46 = arith.constant dense<0.000000e+00> : vector<4x32xf32>
      %70 = tpu.matmul %62, %69, %cst_46 {dimension_numbers = #tpu.dot_dimension_numbers<[1], [0], [0], [1], [0, 0, 1, 1], [], []>} : vector<4x64xf32>, vector<64x32xf32>, vector<4x32xf32> -> vector<4x32xf32>
      %c0_47 = arith.constant 0 : index
      %c0_48 = arith.constant 0 : index
      %71 = vector.load %arg11[%c0_47, %c0_48] : memref<1x32xf32, #tpu.memory_space<vmem>>, vector<1x32xf32>
      %72 = vector.broadcast %71 : vector<1x32xf32> to vector<4x32xf32>
      %73 = arith.addf %70, %72 : vector<4x32xf32>
      %74 = vector.shape_cast %73 : vector<4x32xf32> to vector<4x8x4xf32>
      %c0_49 = arith.constant 0 : index
      %c0_50 = arith.constant 0 : index
      %c0_51 = arith.constant 0 : index
      %75 = vector.load %arg17[%c0_49, %c0_50, %c0_51] : memref<4x8x4xf32, #tpu.memory_space<vmem>>, vector<4x8x4xf32>
      tpu.vector_store %arg17[%c0_49, %c0_50, %c0_51], %74 {strides = array<i32>} : memref<4x8x4xf32, #tpu.memory_space<vmem>>, vector<4x8x4xf32>,
      %c0_52 = arith.constant 0 : index
      %c0_53 = arith.constant 0 : index
      %76 = vector.load %arg12[%c0_52, %c0_53] : memref<64x8xf32, #tpu.memory_space<vmem>>, vector<64x8xf32>
      %cst_54 = arith.constant dense<0.000000e+00> : vector<4x8xf32>
      %77 = tpu.matmul %68, %76, %cst_54 {dimension_numbers = #tpu.dot_dimension_numbers<[1], [0], [0], [1], [0, 0, 1, 1], [], []>} : vector<4x64xf32>, vector<64x8xf32>, vector<4x8xf32> -> vector<4x8xf32>
      %c0_55 = arith.constant 0 : index
      %c0_56 = arith.constant 0 : index
      %78 = vector.load %arg13[%c0_55, %c0_56] : memref<1x8xf32, #tpu.memory_space<vmem>>, vector<1x8xf32>
      %79 = vector.broadcast %78 : vector<1x8xf32> to vector<4x8xf32>
      %80 = arith.addf %77, %79 : vector<4x8xf32>
      %81 = vector.shape_cast %80 : vector<4x8xf32> to vector<4x8x1xf32>
      %c0_57 = arith.constant 0 : index
      %c0_58 = arith.constant 0 : index
      %c0_59 = arith.constant 0 : index
      %82 = vector.load %arg18[%c0_57, %c0_58, %c0_59] : memref<4x8x1xf32, #tpu.memory_space<vmem>>, vector<4x8x1xf32>
      tpu.vector_store %arg18[%c0_57, %c0_58, %c0_59], %81 {strides = array<i32>} : memref<4x8x1xf32, #tpu.memory_space<vmem>>, vector<4x8x1xf32>,
    } else {
    }
    %c0 = arith.constant 0 : index
    %c0_1 = arith.constant 0 : index
    %c0_2 = arith.constant 0 : index
    %3 = vector.load %arg2[%c0, %c0_1, %c0_2] : memref<1x4x256xf32, #tpu.memory_space<vmem>>, vector<1x4x256xf32>
    %4 = vector.shape_cast %3 : vector<1x4x256xf32> to vector<4x256xf32>
    %c0_3 = arith.constant 0 : index
    %c0_4 = arith.constant 0 : index
    %5 = vector.load %arg4[%c0_3, %c0_4] : memref<4x1xf32, #tpu.memory_space<vmem>>, vector<4x1xf32>
    %6 = vector.broadcast %5 : vector<4x1xf32> to vector<4x256xf32>
    %7 = arith.mulf %4, %6 : vector<4x256xf32>
    %c0_5 = arith.constant 0 : index
    %c0_6 = arith.constant 0 : index
    %8 = vector.load %arg5[%c0_5, %c0_6] : memref<4x1xf32, #tpu.memory_space<vmem>>, vector<4x1xf32>
    %9 = vector.broadcast %8 : vector<4x1xf32> to vector<4x256xf32>
    %10 = arith.addf %7, %9 : vector<4x256xf32>
    %c0_7 = arith.constant 0 : index
    %c0_8 = arith.constant 0 : index
    %11 = vector.load %arg14[%c0_7, %c0_8] : memref<8x4xf32, #tpu.memory_space<vmem>>, vector<8x4xf32>
    %cst = arith.constant dense<0.000000e+00> : vector<8x256xf32>
    %12 = tpu.matmul %11, %4, %cst {dimension_numbers = #tpu.dot_dimension_numbers<[1], [0], [0], [1], [0, 0, 1, 1], [], []>} : vector<8x4xf32>, vector<4x256xf32>, vector<8x256xf32> -> vector<8x256xf32>
    %c0_9 = arith.constant 0 : index
    %c0_10 = arith.constant 0 : index
    %13 = vector.load %arg15[%c0_9, %c0_10] : memref<8x1xf32, #tpu.memory_space<vmem>>, vector<8x1xf32>
    %14 = vector.broadcast %13 : vector<8x1xf32> to vector<8x256xf32>
    %15 = arith.addf %12, %14 : vector<8x256xf32>
    %c2_i32 = arith.constant 2 : i32
    %16 = arith.muli %arg1, %c2_i32 : i32
    %c0_i32_11 = arith.constant 0 : i32
    %17 = arith.addi %16, %c0_i32_11 : i32
    %18 = arith.index_cast %17 : i32 to index
    %c0_12 = arith.constant 0 : index
    %c0_13 = arith.constant 0 : index
    %19 = vector.load %arg17[%18, %c0_12, %c0_13] : memref<4x8x4xf32, #tpu.memory_space<vmem>>, vector<1x8x4xf32>
    %20 = vector.shape_cast %19 : vector<1x8x4xf32> to vector<8x4xf32>
    %c0_i32_14 = arith.constant 0 : i32
    %21 = arith.addi %16, %c0_i32_14 : i32
    %22 = arith.index_cast %21 : i32 to index
    %c0_15 = arith.constant 0 : index
    %c0_16 = arith.constant 0 : index
    %23 = vector.load %arg18[%22, %c0_15, %c0_16] : memref<4x8x1xf32, #tpu.memory_space<vmem>>, vector<1x8x1xf32>
    %24 = vector.shape_cast %23 : vector<1x8x1xf32> to vector<8x1xf32>
    %25 = vector.extract_strided_slice %10 {offsets = [0, 0], sizes = [4, 128], strides = [1, 1]} : vector<4x256xf32> to vector<4x128xf32>
    %cst_17 = arith.constant dense<0.000000e+00> : vector<8x128xf32>
    %26 = tpu.matmul %20, %25, %cst_17 {dimension_numbers = #tpu.dot_dimension_numbers<[1], [0], [0], [1], [0, 0, 1, 1], [], []>} : vector<8x4xf32>, vector<4x128xf32>, vector<8x128xf32> -> vector<8x128xf32>
    %27 = vector.broadcast %24 : vector<8x1xf32> to vector<8x128xf32>
    %28 = arith.addf %26, %27 : vector<8x128xf32>
    %cst_18 = arith.constant 0.000000e+00 : f32
    %29 = vector.broadcast %cst_18 : f32 to vector<8x128xf32>
    %30 = arith.maximumf %28, %29 : vector<8x128xf32>
    %31 = vector.extract_strided_slice %15 {offsets = [0, 0], sizes = [8, 128], strides = [1, 1]} : vector<8x256xf32> to vector<8x128xf32>
    %32 = arith.addf %31, %30 : vector<8x128xf32>
    %c0_19 = arith.constant 0 : index
    %c0_20 = arith.constant 0 : index
    %c0_21 = arith.constant 0 : index
    %33 = vector.load %arg16[%c0_19, %c0_20, %c0_21] : memref<1x8x256xf32, #tpu.memory_space<vmem>>, vector<1x8x128xf32>
    %34 = vector.shape_cast %33 : vector<1x8x128xf32> to vector<8x128xf32>
    %35 = vector.shape_cast %32 : vector<8x128xf32> to vector<1x8x128xf32>
    tpu.vector_store %arg16[%c0_19, %c0_20, %c0_21], %35 {strides = array<i32>} : memref<1x8x256xf32, #tpu.memory_space<vmem>>, vector<1x8x128xf32>,
    %c1_i32 = arith.constant 1 : i32
    %36 = arith.addi %16, %c1_i32 : i32
    %37 = arith.index_cast %36 : i32 to index
    %c0_22 = arith.constant 0 : index
    %c0_23 = arith.constant 0 : index
    %38 = vector.load %arg17[%37, %c0_22, %c0_23] : memref<4x8x4xf32, #tpu.memory_space<vmem>>, vector<1x8x4xf32>
    %39 = vector.shape_cast %38 : vector<1x8x4xf32> to vector<8x4xf32>
    %c1_i32_24 = arith.constant 1 : i32
    %40 = arith.addi %16, %c1_i32_24 : i32
    %41 = arith.index_cast %40 : i32 to index
    %c0_25 = arith.constant 0 : index
    %c0_26 = arith.constant 0 : index
    %42 = vector.load %arg18[%41, %c0_25, %c0_26] : memref<4x8x1xf32, #tpu.memory_space<vmem>>, vector<1x8x1xf32>
    %43 = vector.shape_cast %42 : vector<1x8x1xf32> to vector<8x1xf32>
    %44 = vector.extract_strided_slice %10 {offsets = [0, 128], sizes = [4, 128], strides = [1, 1]} : vector<4x256xf32> to vector<4x128xf32>
    %cst_27 = arith.constant dense<0.000000e+00> : vector<8x128xf32>
    %45 = tpu.matmul %39, %44, %cst_27 {dimension_numbers = #tpu.dot_dimension_numbers<[1], [0], [0], [1], [0, 0, 1, 1], [], []>} : vector<8x4xf32>, vector<4x128xf32>, vector<8x128xf32> -> vector<8x128xf32>
    %46 = vector.broadcast %43 : vector<8x1xf32> to vector<8x128xf32>
    %47 = arith.addf %45, %46 : vector<8x128xf32>
    %cst_28 = arith.constant 0.000000e+00 : f32
    %48 = vector.broadcast %cst_28 : f32 to vector<8x128xf32>
    %49 = arith.maximumf %47, %48 : vector<8x128xf32>
    %50 = vector.extract_strided_slice %15 {offsets = [0, 128], sizes = [8, 128], strides = [1, 1]} : vector<8x256xf32> to vector<8x128xf32>
    %51 = arith.addf %50, %49 : vector<8x128xf32>
    %c0_29 = arith.constant 0 : index
    %c0_30 = arith.constant 0 : index
    %c128 = arith.constant 128 : index
    %52 = vector.load %arg16[%c0_29, %c0_30, %c128] : memref<1x8x256xf32, #tpu.memory_space<vmem>>, vector<1x8x128xf32>
    %53 = vector.shape_cast %52 : vector<1x8x128xf32> to vector<8x128xf32>
    %54 = vector.shape_cast %51 : vector<8x128xf32> to vector<1x8x128xf32>
    tpu.vector_store %arg16[%c0_29, %c0_30, %c128], %54 {strides = array<i32>} : memref<1x8x256xf32, #tpu.memory_space<vmem>>, vector<1x8x128xf32>,
    return
  }
  func.func @transform_0(%arg0: i32, %arg1: i32) -> (i32, i32, i32) {
    %c0_i32 = arith.constant 0 : i32
    %c0_i32_0 = arith.constant 0 : i32
    return %arg0, %c0_i32, %arg1 : i32, i32, i32
  }
  func.func @transform_1(%arg0: i32, %arg1: i32) -> (i32, i32, i32) {
    %c0_i32 = arith.constant 0 : i32
    %c0_i32_0 = arith.constant 0 : i32
    %c0_i32_1 = arith.constant 0 : i32
    return %arg0, %c0_i32, %c0_i32_0 : i32, i32, i32
  }
  func.func @transform_2(%arg0: i32, %arg1: i32) -> (i32, i32) {
    %c0_i32 = arith.constant 0 : i32
    %c0_i32_0 = arith.constant 0 : i32
    %c0_i32_1 = arith.constant 0 : i32
    return %c0_i32, %c0_i32_0 : i32, i32
  }
  func.func @transform_3(%arg0: i32, %arg1: i32) -> (i32, i32) {
    %c0_i32 = arith.constant 0 : i32
    %c0_i32_0 = arith.constant 0 : i32
    %c0_i32_1 = arith.constant 0 : i32
    return %c0_i32, %c0_i32_0 : i32, i32
  }
  func.func @transform_4(%arg0: i32, %arg1: i32) -> (i32, i32) {
    %c0_i32 = arith.constant 0 : i32
    %c0_i32_0 = arith.constant 0 : i32
    %c0_i32_1 = arith.constant 0 : i32
    return %c0_i32, %c0_i32_0 : i32, i32
  }
  func.func @transform_5(%arg0: i32, %arg1: i32) -> (i32, i32) {
    %c0_i32 = arith.constant 0 : i32
    %c0_i32_0 = arith.constant 0 : i32
    %c0_i32_1 = arith.constant 0 : i32
    return %c0_i32, %c0_i32_0 : i32, i32
  }
  func.func @transform_6(%arg0: i32, %arg1: i32) -> (i32, i32) {
    %c0_i32 = arith.constant 0 : i32
    %c0_i32_0 = arith.constant 0 : i32
    %c0_i32_1 = arith.constant 0 : i32
    return %c0_i32, %c0_i32_0 : i32, i32
  }
  func.func @transform_7(%arg0: i32, %arg1: i32) -> (i32, i32) {
    %c0_i32 = arith.constant 0 : i32
    %c0_i32_0 = arith.constant 0 : i32
    %c0_i32_1 = arith.constant 0 : i32
    return %c0_i32, %c0_i32_0 : i32, i32
  }
  func.func @transform_8(%arg0: i32, %arg1: i32) -> (i32, i32) {
    %c0_i32 = arith.constant 0 : i32
    %c0_i32_0 = arith.constant 0 : i32
    %c0_i32_1 = arith.constant 0 : i32
    return %c0_i32, %c0_i32_0 : i32, i32
  }
  func.func @transform_9(%arg0: i32, %arg1: i32) -> (i32, i32) {
    %c0_i32 = arith.constant 0 : i32
    %c0_i32_0 = arith.constant 0 : i32
    %c0_i32_1 = arith.constant 0 : i32
    return %c0_i32, %c0_i32_0 : i32, i32
  }
  func.func @transform_10(%arg0: i32, %arg1: i32) -> (i32, i32) {
    %c0_i32 = arith.constant 0 : i32
    %c0_i32_0 = arith.constant 0 : i32
    %c0_i32_1 = arith.constant 0 : i32
    return %c0_i32, %c0_i32_0 : i32, i32
  }
  func.func @transform_11(%arg0: i32, %arg1: i32) -> (i32, i32) {
    %c0_i32 = arith.constant 0 : i32
    %c0_i32_0 = arith.constant 0 : i32
    %c0_i32_1 = arith.constant 0 : i32
    return %c0_i32, %c0_i32_0 : i32, i32
  }
  func.func @transform_12(%arg0: i32, %arg1: i32) -> (i32, i32) {
    %c0_i32 = arith.constant 0 : i32
    %c0_i32_0 = arith.constant 0 : i32
    %c0_i32_1 = arith.constant 0 : i32
    return %c0_i32, %c0_i32_0 : i32, i32
  }
  func.func @transform_13(%arg0: i32, %arg1: i32) -> (i32, i32) {
    %c0_i32 = arith.constant 0 : i32
    %c0_i32_0 = arith.constant 0 : i32
    %c0_i32_1 = arith.constant 0 : i32
    return %c0_i32, %c0_i32_0 : i32, i32
  }
  func.func @transform_14(%arg0: i32, %arg1: i32) -> (i32, i32, i32) {
    %c0_i32 = arith.constant 0 : i32
    %c0_i32_0 = arith.constant 0 : i32
    return %arg0, %c0_i32, %arg1 : i32, i32, i32
  }
}

</mosaic_0001>

<llo_original>
// kernel: tpu_custom_call.1
$region0: #{tpu_custom_call.1}
  #allocation0 [shape = 'u32[]', space=smem, size = 0x4, offset = 0x4, fixed_abs, tag = 'smem constant byte address 0x4 - core index']
  #allocation1 [shape = 'u32[144,128]{1,0:T(1,128)}', space=vmem, size = 0x12000, scoped, tag = 'internal scratch']
  #allocation2 [shape = 'f32[4,8,4]{2,1,0:T(8,128)}', space=vmem, size = 0x4000, scoped, tag = 'scratch operand']
  #allocation3 [shape = 'f32[4,8,1]{2,1,0:T(8,128)}', space=vmem, size = 0x4000, scoped, tag = 'scratch operand']
  %s0 = inlined_call_operand.vmem [shape: f32[2,4,512], index: 0, kind: input, shape index: {}]
  %s1 = inlined_call_operand.vmem [shape: f32[2,4,6], index: 1, kind: input, shape index: {}]
  %s2 = inlined_call_operand.vmem [shape: f32[4,1], index: 2, kind: input, shape index: {}]
  %s3 = inlined_call_operand.vmem [shape: f32[4,1], index: 3, kind: input, shape index: {}]
  %s4 = inlined_call_operand.vmem [shape: f32[6,64], index: 4, kind: input, shape index: {}]
  %s5 = inlined_call_operand.vmem [shape: f32[1,64], index: 5, kind: input, shape index: {}]
  %s6 = inlined_call_operand.vmem [shape: f32[6,64], index: 6, kind: input, shape index: {}]
  %s7 = inlined_call_operand.vmem [shape: f32[1,64], index: 7, kind: input, shape index: {}]
  %s8 = inlined_call_operand.vmem [shape: f32[64,32], index: 8, kind: input, shape index: {}]
  %s9 = inlined_call_operand.vmem [shape: f32[1,32], index: 9, kind: input, shape index: {}]
  %s10 = inlined_call_operand.vmem [shape: f32[64,8], index: 10, kind: input, shape index: {}]
  %s11 = inlined_call_operand.vmem [shape: f32[1,8], index: 11, kind: input, shape index: {}]
  %s12 = inlined_call_operand.vmem [shape: f32[8,4], index: 12, kind: input, shape index: {}]
  %s13 = inlined_call_operand.vmem [shape: f32[8,1], index: 13, kind: input, shape index: {}]
  %s14 = inlined_call_operand.hbm [shape: f32[2,8,512], index: 14, kind: output, shape index: {}]
  %s15 = sld [smem:[#allocation0]]
  $region93: #{tpu_custom_call.1} parent=0
    _
  %s17 = ssub.s32 1, %s15
  %s18 = scalar_select 0, %s17, %s15
  $region1: #{tpu_custom_call.1} parent=0
    #allocation4 [shape = 'u8[16384]{0}', space=vmem, size = 0x4000, scoped, tag = 'output window, operand 0']
    #allocation5 [shape = 's32[2]{0}', space=sflag, size = 0x8, scoped, tag = 'scoped memory for tpu_custom_call.1']
    %19 = vsyncpa [#allocation5], 0
    %s20 = scalar_lea.sflag [#allocation5], 1
    %21 = vsyncpa %s20, 0
    loop: start=0, step=1, limit=6
    $region2: #{tpu_custom_call.1} parent=1 // loop_pre_header
      _
    $region3: #{tpu_custom_call.1} parent=1 // loop_header
      %s23 = sphi 0, %s27
      %p24 = scmp.ge.s32.totalorder %s23, 6
      %s30 = sphi 0, %s42
      %s31 = sphi 0, %s38
      %s32 = sphi 0, %s30
      %s33 = sphi 0, %s31
      %s34 = sphi 0, %s32
      %s35 = sphi 0, %s33
      %s47 = sphi 0, %s49
      %s50 = sphi 0, %s47
      %s51 = sphi 0, %s50
      %s67 = sphi 0, %s51
      %s73 = sphi 0, %s75
      %s76 = sphi 0, %s73
      %s77 = sphi 0, %s76
      %s93 = sphi 0, %s77
      %s97 = sphi 0, %s97
      %s99 = sphi 0, %s97
      %s100 = sphi 0, %s99
      %s114 = sphi 0, %s100
      %s118 = sphi 0, %s118
      %s120 = sphi 0, %s118
      %s121 = sphi 0, %s120
      %s135 = sphi 0, %s121
      %s139 = sphi 0, %s139
      %s141 = sphi 0, %s139
      %s142 = sphi 0, %s141
      %s156 = sphi 0, %s142
      %s160 = sphi 0, %s160
      %s162 = sphi 0, %s160
      %s163 = sphi 0, %s162
      %s177 = sphi 0, %s163
      %s181 = sphi 0, %s181
      %s183 = sphi 0, %s181
      %s184 = sphi 0, %s183
      %s198 = sphi 0, %s184
      %s202 = sphi 0, %s202
      %s204 = sphi 0, %s202
      %s205 = sphi 0, %s204
      %s219 = sphi 0, %s205
      %s223 = sphi 0, %s223
      %s225 = sphi 0, %s223
      %s226 = sphi 0, %s225
      %s240 = sphi 0, %s226
      %s244 = sphi 0, %s244
      %s246 = sphi 0, %s244
      %s247 = sphi 0, %s246
      %s261 = sphi 0, %s247
      %s265 = sphi 0, %s265
      %s267 = sphi 0, %s265
      %s268 = sphi 0, %s267
      %s282 = sphi 0, %s268
      %s286 = sphi 0, %s286
      %s288 = sphi 0, %s286
      %s289 = sphi 0, %s288
      %s303 = sphi 0, %s289
      %s307 = sphi 0, %s307
      %s309 = sphi 0, %s307
      %s310 = sphi 0, %s309
      %s324 = sphi 0, %s310
      %s328 = sphi 0, %s328
      %s330 = sphi 0, %s328
      %s331 = sphi 0, %s330
      %s345 = sphi 0, %s331
      %s353 = sphi 0, %s355
      %s356 = sphi 0, %s353
      %s357 = sphi 0, %s356
      %s373 = sphi 0, %s357
    $region4: #{tpu_custom_call.1} parent=1 // loop_header_branch
      %26 = sbr.rel (%p24) target = $region8
    $region5: #{tpu_custom_call.1} parent=1 // loop_body
      %s28 = ssub.s32 %s23, 1
      %s29 = ssub.s32 %s23, 2
      %s36 = sadd.s32 1, %s31
      %p37 = scmp.ge.s32.totalorder %s36, 2
      %s38 = scalar_select %p37, 0, %s36
      %s39 = sadd.s32 1, %s30
      %s40 = scalar_select %p37, %s39, %s30
      %p41 = scmp.ge.s32.totalorder %s40, 2
      %s42 = scalar_select %p41, 0, %s40
      %s43 = ssub.s32 %s30, %s42
      %s44 = ssub.s32 %s31, %s38
      %s45 = sor.u32 %s43, %s44
      %p46 = scmp.eq.s32.totalorder %s45, 0
      %s48 = sadd.s32 %s47, 1
      %s49 = scalar_select %p46, %s47, %s48
      %p52 = pneg %p46
      %p53 = scmp.eq.s32.totalorder %s23, 3
      %p54 = por %p52, %p53
      %p55 = scmp.ne.s32.totalorder %s47, %s50
      %p56 = scmp.eq.s32.totalorder %s23, 0
      %p57 = por %p55, %p56
      %p58 = scmp.ne.s32.totalorder %s47, %s50
      %p59 = scmp.eq.s32.totalorder %s28, 3
      %p60 = por %p58, %p59
      %p61 = scmp.ne.s32.totalorder %s50, %s51
      %p62 = scmp.eq.s32.totalorder %s28, 0
      %p63 = por %p61, %p62
      %p64 = scmp.ne.s32.totalorder %s50, %s51
      %p65 = scmp.eq.s32.totalorder %s29, 3
      %p66 = por %p64, %p65
      %p68 = scmp.ne.s32.totalorder %s51, %s67
      %p69 = scmp.eq.s32.totalorder %s29, 0
      %p70 = por %p68, %p69
      %s71 = ssub.s32 %s30, %s42
      %p72 = scmp.eq.s32.totalorder %s71, 0
      %s74 = sadd.s32 %s73, 1
      %s75 = scalar_select %p72, %s73, %s74
      %p78 = pneg %p72
      %p79 = scmp.eq.s32.totalorder %s23, 3
      %p80 = por %p78, %p79
      %p81 = scmp.ne.s32.totalorder %s73, %s76
      %p82 = scmp.eq.s32.totalorder %s23, 0
      %p83 = por %p81, %p82
      %p84 = scmp.ne.s32.totalorder %s73, %s76
      %p85 = scmp.eq.s32.totalorder %s28, 3
      %p86 = por %p84, %p85
      %p87 = scmp.ne.s32.totalorder %s76, %s77
      %p88 = scmp.eq.s32.totalorder %s28, 0
      %p89 = por %p87, %p88
      %p90 = scmp.ne.s32.totalorder %s76, %s77
      %p91 = scmp.eq.s32.totalorder %s29, 3
      %p92 = por %p90, %p91
      %p94 = scmp.ne.s32.totalorder %s77, %s93
      %p95 = scmp.eq.s32.totalorder %s29, 0
      %p96 = por %p94, %p95
      %s98 = sadd.s32 %s97, 1
      %p101 = scmp.eq.s32.totalorder %s23, 3
      %p102 = scmp.ne.s32.totalorder %s97, %s99
      %p103 = scmp.eq.s32.totalorder %s23, 0
      %p104 = por %p102, %p103
      %p105 = scmp.ne.s32.totalorder %s97, %s99
      %p106 = scmp.eq.s32.totalorder %s28, 3
      %p107 = por %p105, %p106
      %p108 = scmp.ne.s32.totalorder %s99, %s100
      %p109 = scmp.eq.s32.totalorder %s28, 0
      %p110 = por %p108, %p109
      %p111 = scmp.ne.s32.totalorder %s99, %s100
      %p112 = scmp.eq.s32.totalorder %s29, 3
      %p113 = por %p111, %p112
      %p115 = scmp.ne.s32.totalorder %s100, %s114
      %p116 = scmp.eq.s32.totalorder %s29, 0
      %p117 = por %p115, %p116
      %s119 = sadd.s32 %s118, 1
      %p122 = scmp.eq.s32.totalorder %s23, 3
      %p123 = scmp.ne.s32.totalorder %s118, %s120
      %p124 = scmp.eq.s32.totalorder %s23, 0
      %p125 = por %p123, %p124
      %p126 = scmp.ne.s32.totalorder %s118, %s120
      %p127 = scmp.eq.s32.totalorder %s28, 3
      %p128 = por %p126, %p127
      %p129 = scmp.ne.s32.totalorder %s120, %s121
      %p130 = scmp.eq.s32.totalorder %s28, 0
      %p131 = por %p129, %p130
      %p132 = scmp.ne.s32.totalorder %s120, %s121
      %p133 = scmp.eq.s32.totalorder %s29, 3
      %p134 = por %p132, %p133
      %p136 = scmp.ne.s32.totalorder %s121, %s135
      %p137 = scmp.eq.s32.totalorder %s29, 0
      %p138 = por %p136, %p137
      %s140 = sadd.s32 %s139, 1
      %p143 = scmp.eq.s32.totalorder %s23, 3
      %p144 = scmp.ne.s32.totalorder %s139, %s141
      %p145 = scmp.eq.s32.totalorder %s23, 0
      %p146 = por %p144, %p145
      %p147 = scmp.ne.s32.totalorder %s139, %s141
      %p148 = scmp.eq.s32.totalorder %s28, 3
      %p149 = por %p147, %p148
      %p150 = scmp.ne.s32.totalorder %s141, %s142
      %p151 = scmp.eq.s32.totalorder %s28, 0
      %p152 = por %p150, %p151
      %p153 = scmp.ne.s32.totalorder %s141, %s142
      %p154 = scmp.eq.s32.totalorder %s29, 3
      %p155 = por %p153, %p154
      %p157 = scmp.ne.s32.totalorder %s142, %s156
      %p158 = scmp.eq.s32.totalorder %s29, 0
      %p159 = por %p157, %p158
      %s161 = sadd.s32 %s160, 1
      %p164 = scmp.eq.s32.totalorder %s23, 3
      %p165 = scmp.ne.s32.totalorder %s160, %s162
      %p166 = scmp.eq.s32.totalorder %s23, 0
      %p167 = por %p165, %p166
      %p168 = scmp.ne.s32.totalorder %s160, %s162
      %p169 = scmp.eq.s32.totalorder %s28, 3
      %p170 = por %p168, %p169
      %p171 = scmp.ne.s32.totalorder %s162, %s163
      %p172 = scmp.eq.s32.totalorder %s28, 0
      %p173 = por %p171, %p172
      %p174 = scmp.ne.s32.totalorder %s162, %s163
      %p175 = scmp.eq.s32.totalorder %s29, 3
      %p176 = por %p174, %p175
      %p178 = scmp.ne.s32.totalorder %s163, %s177
      %p179 = scmp.eq.s32.totalorder %s29, 0
      %p180 = por %p178, %p179
      %s182 = sadd.s32 %s181, 1
      %p185 = scmp.eq.s32.totalorder %s23, 3
      %p186 = scmp.ne.s32.totalorder %s181, %s183
      %p187 = scmp.eq.s32.totalorder %s23, 0
      %p188 = por %p186, %p187
      %p189 = scmp.ne.s32.totalorder %s181, %s183
      %p190 = scmp.eq.s32.totalorder %s28, 3
      %p191 = por %p189, %p190
      %p192 = scmp.ne.s32.totalorder %s183, %s184
      %p193 = scmp.eq.s32.totalorder %s28, 0
      %p194 = por %p192, %p193
      %p195 = scmp.ne.s32.totalorder %s183, %s184
      %p196 = scmp.eq.s32.totalorder %s29, 3
      %p197 = por %p195, %p196
      %p199 = scmp.ne.s32.totalorder %s184, %s198
      %p200 = scmp.eq.s32.totalorder %s29, 0
      %p201 = por %p199, %p200
      %s203 = sadd.s32 %s202, 1
      %p206 = scmp.eq.s32.totalorder %s23, 3
      %p207 = scmp.ne.s32.totalorder %s202, %s204
      %p208 = scmp.eq.s32.totalorder %s23, 0
      %p209 = por %p207, %p208
      %p210 = scmp.ne.s32.totalorder %s202, %s204
      %p211 = scmp.eq.s32.totalorder %s28, 3
      %p212 = por %p210, %p211
      %p213 = scmp.ne.s32.totalorder %s204, %s205
      %p214 = scmp.eq.s32.totalorder %s28, 0
      %p215 = por %p213, %p214
      %p216 = scmp.ne.s32.totalorder %s204, %s205
      %p217 = scmp.eq.s32.totalorder %s29, 3
      %p218 = por %p216, %p217
      %p220 = scmp.ne.s32.totalorder %s205, %s219
      %p221 = scmp.eq.s32.totalorder %s29, 0
      %p222 = por %p220, %p221
      %s224 = sadd.s32 %s223, 1
      %p227 = scmp.eq.s32.totalorder %s23, 3
      %p228 = scmp.ne.s32.totalorder %s223, %s225
      %p229 = scmp.eq.s32.totalorder %s23, 0
      %p230 = por %p228, %p229
      %p231 = scmp.ne.s32.totalorder %s223, %s225
      %p232 = scmp.eq.s32.totalorder %s28, 3
      %p233 = por %p231, %p232
      %p234 = scmp.ne.s32.totalorder %s225, %s226
      %p235 = scmp.eq.s32.totalorder %s28, 0
      %p236 = por %p234, %p235
      %p237 = scmp.ne.s32.totalorder %s225, %s226
      %p238 = scmp.eq.s32.totalorder %s29, 3
      %p239 = por %p237, %p238
      %p241 = scmp.ne.s32.totalorder %s226, %s240
      %p242 = scmp.eq.s32.totalorder %s29, 0
      %p243 = por %p241, %p242
      %s245 = sadd.s32 %s244, 1
      %p248 = scmp.eq.s32.totalorder %s23, 3
      %p249 = scmp.ne.s32.totalorder %s244, %s246
      %p250 = scmp.eq.s32.totalorder %s23, 0
      %p251 = por %p249, %p250
      %p252 = scmp.ne.s32.totalorder %s244, %s246
      %p253 = scmp.eq.s32.totalorder %s28, 3
      %p254 = por %p252, %p253
      %p255 = scmp.ne.s32.totalorder %s246, %s247
      %p256 = scmp.eq.s32.totalorder %s28, 0
      %p257 = por %p255, %p256
      %p258 = scmp.ne.s32.totalorder %s246, %s247
      %p259 = scmp.eq.s32.totalorder %s29, 3
      %p260 = por %p258, %p259
      %p262 = scmp.ne.s32.totalorder %s247, %s261
      %p263 = scmp.eq.s32.totalorder %s29, 0
      %p264 = por %p262, %p263
      %s266 = sadd.s32 %s265, 1
      %p269 = scmp.eq.s32.totalorder %s23, 3
      %p270 = scmp.ne.s32.totalorder %s265, %s267
      %p271 = scmp.eq.s32.totalorder %s23, 0
      %p272 = por %p270, %p271
      %p273 = scmp.ne.s32.totalorder %s265, %s267
      %p274 = scmp.eq.s32.totalorder %s28, 3
      %p275 = por %p273, %p274
      %p276 = scmp.ne.s32.totalorder %s267, %s268
      %p277 = scmp.eq.s32.totalorder %s28, 0
      %p278 = por %p276, %p277
      %p279 = scmp.ne.s32.totalorder %s267, %s268
      %p280 = scmp.eq.s32.totalorder %s29, 3
      %p281 = por %p279, %p280
      %p283 = scmp.ne.s32.totalorder %s268, %s282
      %p284 = scmp.eq.s32.totalorder %s29, 0
      %p285 = por %p283, %p284
      %s287 = sadd.s32 %s286, 1
      %p290 = scmp.eq.s32.totalorder %s23, 3
      %p291 = scmp.ne.s32.totalorder %s286, %s288
      %p292 = scmp.eq.s32.totalorder %s23, 0
      %p293 = por %p291, %p292
      %p294 = scmp.ne.s32.totalorder %s286, %s288
      %p295 = scmp.eq.s32.totalorder %s28, 3
      %p296 = por %p294, %p295
      %p297 = scmp.ne.s32.totalorder %s288, %s289
      %p298 = scmp.eq.s32.totalorder %s28, 0
      %p299 = por %p297, %p298
      %p300 = scmp.ne.s32.totalorder %s288, %s289
      %p301 = scmp.eq.s32.totalorder %s29, 3
      %p302 = por %p300, %p301
      %p304 = scmp.ne.s32.totalorder %s289, %s303
      %p305 = scmp.eq.s32.totalorder %s29, 0
      %p306 = por %p304, %p305
      %s308 = sadd.s32 %s307, 1
      %p311 = scmp.eq.s32.totalorder %s23, 3
      %p312 = scmp.ne.s32.totalorder %s307, %s309
      %p313 = scmp.eq.s32.totalorder %s23, 0
      %p314 = por %p312, %p313
      %p315 = scmp.ne.s32.totalorder %s307, %s309
      %p316 = scmp.eq.s32.totalorder %s28, 3
      %p317 = por %p315, %p316
      %p318 = scmp.ne.s32.totalorder %s309, %s310
      %p319 = scmp.eq.s32.totalorder %s28, 0
      %p320 = por %p318, %p319
      %p321 = scmp.ne.s32.totalorder %s309, %s310
      %p322 = scmp.eq.s32.totalorder %s29, 3
      %p323 = por %p321, %p322
      %p325 = scmp.ne.s32.totalorder %s310, %s324
      %p326 = scmp.eq.s32.totalorder %s29, 0
      %p327 = por %p325, %p326
      %s329 = sadd.s32 %s328, 1
      %p332 = scmp.eq.s32.totalorder %s23, 3
      %p333 = scmp.ne.s32.totalorder %s328, %s330
      %p334 = scmp.eq.s32.totalorder %s23, 0
      %p335 = por %p333, %p334
      %p336 = scmp.ne.s32.totalorder %s328, %s330
      %p337 = scmp.eq.s32.totalorder %s28, 3
      %p338 = por %p336, %p337
      %p339 = scmp.ne.s32.totalorder %s330, %s331
      %p340 = scmp.eq.s32.totalorder %s28, 0
      %p341 = por %p339, %p340
      %p342 = scmp.ne.s32.totalorder %s330, %s331
      %p343 = scmp.eq.s32.totalorder %s29, 3
      %p344 = por %p342, %p343
      %p346 = scmp.ne.s32.totalorder %s331, %s345
      %p347 = scmp.eq.s32.totalorder %s29, 0
      %p348 = por %p346, %p347
      %s349 = ssub.s32 %s30, %s42
      %s350 = ssub.s32 %s31, %s38
      %s351 = sor.u32 %s349, %s350
      %p352 = scmp.eq.s32.totalorder %s351, 0
      %s354 = sadd.s32 %s353, 1
      %s355 = scalar_select %p352, %s353, %s354
      %p358 = pneg %p352
      %p359 = scmp.eq.s32.totalorder %s23, 3
      %p360 = por %p358, %p359
      %p361 = scmp.ne.s32.totalorder %s353, %s356
      %p362 = scmp.eq.s32.totalorder %s23, 0
      %p363 = por %p361, %p362
      %p364 = scmp.ne.s32.totalorder %s353, %s356
      %p365 = scmp.eq.s32.totalorder %s28, 3
      %p366 = por %p364, %p365
      %p367 = scmp.ne.s32.totalorder %s356, %s357
      %p368 = scmp.eq.s32.totalorder %s28, 0
      %p369 = por %p367, %p368
      %p370 = scmp.ne.s32.totalorder %s356, %s357
      %p371 = scmp.eq.s32.totalorder %s29, 3
      %p372 = por %p370, %p371
      %p374 = scmp.ne.s32.totalorder %s357, %s373
      %p375 = scmp.eq.s32.totalorder %s29, 0
      %p376 = por %p374, %p375
      %p377 = scmp.le.s32.totalorder 1, %s23
      %p378 = scmp.lt.s32.totalorder %s23, 5
      %p379 = pnand %p377, %p378
      %p380 = pneg %p379
      // Predicated region
      $region9: #{tpu_custom_call.1} parent=5 // pred_check
        _
      $region10: #{tpu_custom_call.1} parent=5 // pred_check_branch
        %382 = sbr.rel (%p379) target = $region12
      $region11: #{tpu_custom_call.1} parent=5 // pred_region
        %s383 = ssub.s32 %s23, 1
        // Predicated region
        $region13: #{tpu_custom_call.1} parent=11 // pred_check
          %p384 = pneg %p110
        $region14: #{tpu_custom_call.1} parent=11 // pred_check_branch
          %386 = sbr.rel (%p384) target = $region16
        $region15: #{tpu_custom_call.1} parent=11 // pred_region
          _
        $region16: #{tpu_custom_call.1} parent=11 // pred_fallthru
          _
        // Predicated region
        $region17: #{tpu_custom_call.1} parent=11 // pred_check
          %p387 = pneg %p131
        $region18: #{tpu_custom_call.1} parent=11 // pred_check_branch
          %389 = sbr.rel (%p387) target = $region20
        $region19: #{tpu_custom_call.1} parent=11 // pred_region
          _
        $region20: #{tpu_custom_call.1} parent=11 // pred_fallthru
          _
        // Predicated region
        $region21: #{tpu_custom_call.1} parent=11 // pred_check
          %p390 = pneg %p152
        $region22: #{tpu_custom_call.1} parent=11 // pred_check_branch
          %392 = sbr.rel (%p390) target = $region24
        $region23: #{tpu_custom_call.1} parent=11 // pred_region
          _
        $region24: #{tpu_custom_call.1} parent=11 // pred_fallthru
          _
        // Predicated region
        $region25: #{tpu_custom_call.1} parent=11 // pred_check
          %p393 = pneg %p173
        $region26: #{tpu_custom_call.1} parent=11 // pred_check_branch
          %395 = sbr.rel (%p393) target = $region28
        $region27: #{tpu_custom_call.1} parent=11 // pred_region
          _
        $region28: #{tpu_custom_call.1} parent=11 // pred_fallthru
          _
        // Predicated region
        $region29: #{tpu_custom_call.1} parent=11 // pred_check
          %p396 = pneg %p194
        $region30: #{tpu_custom_call.1} parent=11 // pred_check_branch
          %398 = sbr.rel (%p396) target = $region32
        $region31: #{tpu_custom_call.1} parent=11 // pred_region
          _
        $region32: #{tpu_custom_call.1} parent=11 // pred_fallthru
          _
        // Predicated region
        $region33: #{tpu_custom_call.1} parent=11 // pred_check
          %p399 = pneg %p215
        $region34: #{tpu_custom_call.1} parent=11 // pred_check_branch
          %401 = sbr.rel (%p399) target = $region36
        $region35: #{tpu_custom_call.1} parent=11 // pred_region
          _
        $region36: #{tpu_custom_call.1} parent=11 // pred_fallthru
          _
        // Predicated region
        $region37: #{tpu_custom_call.1} parent=11 // pred_check
          %p402 = pneg %p236
        $region38: #{tpu_custom_call.1} parent=11 // pred_check_branch
          %404 = sbr.rel (%p402) target = $region40
        $region39: #{tpu_custom_call.1} parent=11 // pred_region
          _
        $region40: #{tpu_custom_call.1} parent=11 // pred_fallthru
          _
        // Predicated region
        $region41: #{tpu_custom_call.1} parent=11 // pred_check
          %p405 = pneg %p257
        $region42: #{tpu_custom_call.1} parent=11 // pred_check_branch
          %407 = sbr.rel (%p405) target = $region44
        $region43: #{tpu_custom_call.1} parent=11 // pred_region
          _
        $region44: #{tpu_custom_call.1} parent=11 // pred_fallthru
          _
        // Predicated region
        $region45: #{tpu_custom_call.1} parent=11 // pred_check
          %p408 = pneg %p278
        $region46: #{tpu_custom_call.1} parent=11 // pred_check_branch
          %410 = sbr.rel (%p408) target = $region48
        $region47: #{tpu_custom_call.1} parent=11 // pred_region
          _
        $region48: #{tpu_custom_call.1} parent=11 // pred_fallthru
          _
        // Predicated region
        $region49: #{tpu_custom_call.1} parent=11 // pred_check
          %p411 = pneg %p299
        $region50: #{tpu_custom_call.1} parent=11 // pred_check_branch
          %413 = sbr.rel (%p411) target = $region52
        $region51: #{tpu_custom_call.1} parent=11 // pred_region
          _
        $region52: #{tpu_custom_call.1} parent=11 // pred_fallthru
          _
        // Predicated region
        $region53: #{tpu_custom_call.1} parent=11 // pred_check
          %p414 = pneg %p320
        $region54: #{tpu_custom_call.1} parent=11 // pred_check_branch
          %416 = sbr.rel (%p414) target = $region56
        $region55: #{tpu_custom_call.1} parent=11 // pred_region
          _
        $region56: #{tpu_custom_call.1} parent=11 // pred_fallthru
          _
        // Predicated region
        $region57: #{tpu_custom_call.1} parent=11 // pred_check
          %p417 = pneg %p341
        $region58: #{tpu_custom_call.1} parent=11 // pred_check_branch
          %419 = sbr.rel (%p417) target = $region60
        $region59: #{tpu_custom_call.1} parent=11 // pred_region
          _
        $region60: #{tpu_custom_call.1} parent=11 // pred_fallthru
          _
      $region12: #{tpu_custom_call.1} parent=5 // pred_fallthru
        _
      %p420 = scmp.lt.s32.totalorder %s23, 4
      // Predicated region
      $region61: #{tpu_custom_call.1} parent=5 // pred_check
        %p421 = pneg %p420
      $region62: #{tpu_custom_call.1} parent=5 // pred_check_branch
        %423 = sbr.rel (%p421) target = $region64
      $region63: #{tpu_custom_call.1} parent=5 // pred_region
        // Predicated region
        $region65: #{tpu_custom_call.1} parent=63 // pred_check
          %p424 = pneg %p57
        $region66: #{tpu_custom_call.1} parent=63 // pred_check_branch
          %426 = sbr.rel (%p424) target = $region68
        $region67: #{tpu_custom_call.1} parent=63 // pred_region
          %s427 = smul.u32 2, %s31
          %p428 = scmp.lt.s32.totalorder %s30, 1
          %s429 = scalar_select %p428, %s30, 1
          %p430 = scmp.lt.s32.totalorder %s427, 3
          %s431 = scalar_select %p430, %s427, 3
          %s432 = smul.addr %s429, 4
          %s433 = sadd.s32 %s431, %s432
          %s434 = smul.addr %s433, 4
          %s435 = scalar_lea.vmem %s0, %s434
          %s436 = smul.u32 2, %s31
        $region68: #{tpu_custom_call.1} parent=63 // pred_fallthru
          _
        // Predicated region
        $region69: #{tpu_custom_call.1} parent=63 // pred_check
          %p437 = pneg %p83
        $region70: #{tpu_custom_call.1} parent=63 // pred_check_branch
          %439 = sbr.rel (%p437) target = $region72
        $region71: #{tpu_custom_call.1} parent=63 // pred_region
          %p440 = scmp.lt.s32.totalorder %s30, 1
          %s441 = scalar_select %p440, %s30, 1
          %s442 = smul.addr %s441, 4
          %s443 = scalar_lea.vmem %s1, %s442
        $region72: #{tpu_custom_call.1} parent=63 // pred_fallthru
          _
      $region64: #{tpu_custom_call.1} parent=5 // pred_fallthru
        _
      %p444 = scmp.le.s32.totalorder 1, %s23
      %p445 = scmp.lt.s32.totalorder %s23, 5
      %p446 = pnand %p444, %p445
      %p447 = pneg %p446
      // Predicated region
      $region73: #{tpu_custom_call.1} parent=5 // pred_check
        _
      $region74: #{tpu_custom_call.1} parent=5 // pred_check_branch
        %449 = sbr.rel (%p446) target = $region76
      $region75: #{tpu_custom_call.1} parent=5 // pred_region
        %s450 = ssub.s32 %s23, 1
        %s451 = smul.u32 2, %s33
        %p452 = scmp.lt.s32.totalorder %s32, 1
        %s453 = scalar_select %p452, %s32, 1
        %p454 = scmp.lt.s32.totalorder %s451, 3
        %s455 = scalar_select %p454, %s451, 3
        %s456 = smul.addr %s453, 4
        %s457 = sadd.s32 %s455, %s456
        %s458 = smul.addr %s457, 4
        %s459 = scalar_lea.vmem %s0, %s458
        %p460 = pneg %p63
        %p461 = pneg %p60
        %p462 = scmp.lt.s32.totalorder %s32, 1
        %s463 = scalar_select %p462, %s32, 1
        %s464 = smul.addr %s463, 4
        %s465 = scalar_lea.vmem %s1, %s464
        %p466 = pneg %p89
        %p467 = pneg %p86
        %p468 = pneg %p110
        %p469 = pneg %p107
        %p470 = pneg %p131
        %p471 = pneg %p128
        %p472 = pneg %p152
        %p473 = pneg %p149
        %p474 = pneg %p173
        %p475 = pneg %p170
        %p476 = pneg %p194
        %p477 = pneg %p191
        %p478 = pneg %p215
        %p479 = pneg %p212
        %p480 = pneg %p236
        %p481 = pneg %p233
        %p482 = pneg %p257
        %p483 = pneg %p254
        %p484 = pneg %p278
        %p485 = pneg %p275
        %p486 = pneg %p299
        %p487 = pneg %p296
        %p488 = pneg %p320
        %p489 = pneg %p317
        %p490 = pneg %p341
        %p491 = pneg %p338
        %p492 = pneg %p369
        %p493 = pneg %p366
        %s494 = sand.u32 %s356, 1
        %s495 = scalar_lea.sflag [#allocation5], %s494
        %s496 = sand.u32 %s356, 1
        %s497 = smul.addr %s496, 16
        %s498 = scalar_lea.vmem [#allocation4], %s497
        %s499 = smul.u32 2, %s33
        %p500 = scmp.lt.s32.totalorder %s32, 1
        %s501 = scalar_select %p500, %s32, 1
        %p502 = scmp.lt.s32.totalorder %s499, 3
        %s503 = scalar_select %p502, %s499, 3
        %s504 = smul.addr %s501, 4
        %s505 = sadd.s32 %s503, %s504
        %s506 = smul.addr %s505, 4
        %s507 = scalar_lea.vmem %s0, %s506
        %s508 = smul.u32 2, %s33
        %p509 = scmp.lt.s32.totalorder %s32, 1
        %s510 = scalar_select %p509, %s32, 1
        %s511 = smul.addr %s510, 4
        %s512 = scalar_lea.vmem %s1, %s511
        %s513 = smul.u32 2, %s33
        %p514 = scmp.eq.s32.totalorder %s33, 0
        // Predicated region
        $region77: #{tpu_custom_call.1} parent=75 // pred_check
          %p515 = pneg %p514
        $region78: #{tpu_custom_call.1} parent=75 // pred_check_branch
          %517 = sbr.rel (%p515) target = $region80
        $region79: #{tpu_custom_call.1} parent=75 // pred_region
          %v518 = vld [vmem:[%s512] sm:$0xf]
          %v519 = vld [vmem:[%s4] sm:$0x3f]
          %v520 = vld [vmem:[%s5] sm:$0x1]
          %v522 = vlaneseq
          %v523 = vshrl.u32 %v522, 7
          %v524 = vsub.s32 0, %v523
          %v525 = vrot.slane %v520, %v524
          %vm527 = vcmask 48128
          %v529 = vsel %vm527, %v518, 0
          %vm531 = vcmask 1045504
          %v533 = vsel %vm531, %v519, 0
          %535 = vmatprep.subr.mxu0 0.0
          %536 = vmatpush1.msra.mxu0 0.0
          %537 = vmatprep.subr.mxu0 0.0
          %538 = vmatpush1.msra.mxu0 0.0
          %539 = vmatprep.subr.mxu0 0.0
          %540 = vmatpush1.msra.mxu0 0.0
          %541 = vmatprep.subr.mxu0 0.0
          %542 = vmatpush1.msra.mxu0 0.0
          %543 = vmatprep.subr.mxu0 0.0
          %544 = vmatpush1.msra.mxu0 0.0
          %545 = vmatprep.subr.mxu0 0.0
          %546 = vmatpush1.msra.mxu0 0.0
          %547 = vmatprep.subr.mxu0 0.0
          %548 = vmatpush1.msra.mxu0 0.0
          %549 = vmatprep.subr.mxu0 0.0
          %550 = vmatpush1.msra.mxu0 0.0
          %551 = vmatprep.subr.mxu0 0.0
          %552 = vmatpush1.msra.mxu0 0.0
          %553 = vmatprep.subr.mxu0 0.0
          %554 = vmatpush1.msra.mxu0 0.0
          %555 = vmatprep.subr.mxu0 0.0
          %556 = vmatpush1.msra.mxu0 0.0
          %557 = vmatprep.subr.mxu0 0.0
          %558 = vmatpush1.msra.mxu0 0.0
          %559 = vmatprep.subr.mxu0 0.0
          %560 = vmatpush1.msra.mxu0 0.0
          %561 = vmatprep.subr.mxu0 0.0
          %562 = vmatpush1.msra.mxu0 0.0
          %563 = vmatprep.subr.mxu0 0.0
          %564 = vmatpush1.msra.mxu0 0.0
          %565 = vmatprep.subr.mxu0 0.0
          %566 = vmatpush1.msra.mxu0 %v533
          %567 = vmatprep.subr.mxu0 0.0
          %568 = vmatpush2.msra.mxu0 0.0
          %569 = vmatprep.subr.mxu0 0.0
          %570 = vmatpush2.msra.mxu0 0.0
          %571 = vmatprep.subr.mxu0 0.0
          %572 = vmatpush2.msra.mxu0 0.0
          %573 = vmatprep.subr.mxu0 0.0
          %574 = vmatpush2.msra.mxu0 0.0
          %575 = vmatprep.subr.mxu0 0.0
          %576 = vmatpush2.msra.mxu0 0.0
          %577 = vmatprep.subr.mxu0 0.0
          %578 = vmatpush2.msra.mxu0 0.0
          %579 = vmatprep.subr.mxu0 0.0
          %580 = vmatpush2.msra.mxu0 0.0
          %581 = vmatprep.subr.mxu0 0.0
          %582 = vmatpush2.msra.mxu0 0.0
          %583 = vmatprep.subr.mxu0 0.0
          %584 = vmatpush2.msra.mxu0 0.0
          %585 = vmatprep.subr.mxu0 0.0
          %586 = vmatpush2.msra.mxu0 0.0
          %587 = vmatprep.subr.mxu0 0.0
          %588 = vmatpush2.msra.mxu0 0.0
          %589 = vmatprep.subr.mxu0 0.0
          %590 = vmatpush2.msra.mxu0 0.0
          %591 = vmatprep.subr.mxu0 0.0
          %592 = vmatpush2.msra.mxu0 0.0
          %593 = vmatprep.subr.mxu0 0.0
          %594 = vmatpush2.msra.mxu0 0.0
          %595 = vmatprep.subr.mxu0 0.0
          %596 = vmatpush2.msra.mxu0 0.0
          %597 = vmatprep.subr.mxu0 0.0
          %598 = vmatpush2.msra.mxu0 0.0
          %599 = vmatprep.mubr.f32.mxu0 0.0
          %600 = vmatmul.mubr.f32.gmra.mxu0 %v529
          %v601 = vpop.f32.mrf.mxu0
          %v602 = vadd.f32 %v525, %v601
          %v603 = vpop.f32.mrf.mxu0
          %604 = vdwg.mxu0
          %v605 = vtanh.pop %v602
          %v606 = vld [vmem:[%s6] sm:$0x3f]
          %v607 = vld [vmem:[%s7] sm:$0x1]
          %v609 = vlaneseq
          %v610 = vshrl.u32 %v609, 7
          %v611 = vsub.s32 0, %v610
          %v612 = vrot.slane %v607, %v611
          %v615 = vsel %vm531, %v606, 0
          %617 = vmatprep.subr.mxu0 0.0
          %618 = vmatpush1.msra.mxu0 0.0
          %619 = vmatprep.subr.mxu0 0.0
          %620 = vmatpush1.msra.mxu0 0.0
          %621 = vmatprep.subr.mxu0 0.0
          %622 = vmatpush1.msra.mxu0 0.0
          %623 = vmatprep.subr.mxu0 0.0
          %624 = vmatpush1.msra.mxu0 0.0
          %625 = vmatprep.subr.mxu0 0.0
          %626 = vmatpush1.msra.mxu0 0.0
          %627 = vmatprep.subr.mxu0 0.0
          %628 = vmatpush1.msra.mxu0 0.0
          %629 = vmatprep.subr.mxu0 0.0
          %630 = vmatpush1.msra.mxu0 0.0
          %631 = vmatprep.subr.mxu0 0.0
          %632 = vmatpush1.msra.mxu0 0.0
          %633 = vmatprep.subr.mxu0 0.0
          %634 = vmatpush1.msra.mxu0 0.0
          %635 = vmatprep.subr.mxu0 0.0
          %636 = vmatpush1.msra.mxu0 0.0
          %637 = vmatprep.subr.mxu0 0.0
          %638 = vmatpush1.msra.mxu0 0.0
          %639 = vmatprep.subr.mxu0 0.0
          %640 = vmatpush1.msra.mxu0 0.0
          %641 = vmatprep.subr.mxu0 0.0
          %642 = vmatpush1.msra.mxu0 0.0
          %643 = vmatprep.subr.mxu0 0.0
          %644 = vmatpush1.msra.mxu0 0.0
          %645 = vmatprep.subr.mxu0 0.0
          %646 = vmatpush1.msra.mxu0 0.0
          %647 = vmatprep.subr.mxu0 0.0
          %648 = vmatpush1.msra.mxu0 %v615
          %649 = vmatprep.subr.mxu0 0.0
          %650 = vmatpush2.msra.mxu0 0.0
          %651 = vmatprep.subr.mxu0 0.0
          %652 = vmatpush2.msra.mxu0 0.0
          %653 = vmatprep.subr.mxu0 0.0
          %654 = vmatpush2.msra.mxu0 0.0
          %655 = vmatprep.subr.mxu0 0.0
          %656 = vmatpush2.msra.mxu0 0.0
          %657 = vmatprep.subr.mxu0 0.0
          %658 = vmatpush2.msra.mxu0 0.0
          %659 = vmatprep.subr.mxu0 0.0
          %660 = vmatpush2.msra.mxu0 0.0
          %661 = vmatprep.subr.mxu0 0.0
          %662 = vmatpush2.msra.mxu0 0.0
          %663 = vmatprep.subr.mxu0 0.0
          %664 = vmatpush2.msra.mxu0 0.0
          %665 = vmatprep.subr.mxu0 0.0
          %666 = vmatpush2.msra.mxu0 0.0
          %667 = vmatprep.subr.mxu0 0.0
          %668 = vmatpush2.msra.mxu0 0.0
          %669 = vmatprep.subr.mxu0 0.0
          %670 = vmatpush2.msra.mxu0 0.0
          %671 = vmatprep.subr.mxu0 0.0
          %672 = vmatpush2.msra.mxu0 0.0
          %673 = vmatprep.subr.mxu0 0.0
          %674 = vmatpush2.msra.mxu0 0.0
          %675 = vmatprep.subr.mxu0 0.0
          %676 = vmatpush2.msra.mxu0 0.0
          %677 = vmatprep.subr.mxu0 0.0
          %678 = vmatpush2.msra.mxu0 0.0
          %679 = vmatprep.subr.mxu0 0.0
          %680 = vmatpush2.msra.mxu0 0.0
          %681 = vmatprep.mubr.f32.mxu0 0.0
          %682 = vmatmul.mubr.f32.gmra.mxu0 %v529
          %v683 = vpop.f32.mrf.mxu0
          %v684 = vadd.f32 %v612, %v683
          %v685 = vpop.f32.mrf.mxu0
          %686 = vdwg.mxu0
          %v687 = vtanh.pop %v684
          %v688 = vld [vmem:[%s8] sm:$0xff]
          %v689 = vld [vmem:[%s8 + $0x8] sm:$0xff]
          %v690 = vld [vmem:[%s8 + $0x10] sm:$0xff]
          %v691 = vld [vmem:[%s8 + $0x18] sm:$0xff]
          %v692 = vld [vmem:[%s8 + $0x20] sm:$0xff]
          %v693 = vld [vmem:[%s8 + $0x28] sm:$0xff]
          %v694 = vld [vmem:[%s8 + $0x30] sm:$0xff]
          %v695 = vld [vmem:[%s8 + $0x38] sm:$0xff]
          %v696 = vld [vmem:[%s9] sm:$0x1]
          %v698 = vlaneseq
          %v699 = vshrl.u32 %v698, 7
          %v700 = vsub.s32 0, %v699
          %v701 = vrot.slane %v696, %v700
          %vm703 = vcmask 523264
          %v705 = vsel %vm703, %v605, 0
          %707 = vmatprep.subr.mxu0 0.0
          %708 = vmatpush1.msra.mxu0 0.0
          %709 = vmatprep.subr.mxu0 0.0
          %710 = vmatpush1.msra.mxu0 0.0
          %711 = vmatprep.subr.mxu0 0.0
          %712 = vmatpush1.msra.mxu0 0.0
          %713 = vmatprep.subr.mxu0 0.0
          %714 = vmatpush1.msra.mxu0 0.0
          %715 = vmatprep.subr.mxu0 0.0
          %716 = vmatpush1.msra.mxu0 0.0
          %717 = vmatprep.subr.mxu0 0.0
          %718 = vmatpush1.msra.mxu0 0.0
          %719 = vmatprep.subr.mxu0 0.0
          %720 = vmatpush1.msra.mxu0 0.0
          %721 = vmatprep.subr.mxu0 0.0
          %722 = vmatpush1.msra.mxu0 0.0
          %723 = vmatprep.subr.mxu0 0.0
          %724 = vmatpush1.msra.mxu0 %v695
          %725 = vmatprep.subr.mxu0 0.0
          %726 = vmatpush1.msra.mxu0 %v694
          %727 = vmatprep.subr.mxu0 0.0
          %728 = vmatpush1.msra.mxu0 %v693
          %729 = vmatprep.subr.mxu0 0.0
          %730 = vmatpush1.msra.mxu0 %v692
          %731 = vmatprep.subr.mxu0 0.0
          %732 = vmatpush1.msra.mxu0 %v691
          %733 = vmatprep.subr.mxu0 0.0
          %734 = vmatpush1.msra.mxu0 %v690
          %735 = vmatprep.subr.mxu0 0.0
          %736 = vmatpush1.msra.mxu0 %v689
          %737 = vmatprep.subr.mxu0 0.0
          %738 = vmatpush1.msra.mxu0 %v688
          %739 = vmatprep.subr.mxu0 0.0
          %740 = vmatpush2.msra.mxu0 0.0
          %741 = vmatprep.subr.mxu0 0.0
          %742 = vmatpush2.msra.mxu0 0.0
          %743 = vmatprep.subr.mxu0 0.0
          %744 = vmatpush2.msra.mxu0 0.0
          %745 = vmatprep.subr.mxu0 0.0
          %746 = vmatpush2.msra.mxu0 0.0
          %747 = vmatprep.subr.mxu0 0.0
          %748 = vmatpush2.msra.mxu0 0.0
          %749 = vmatprep.subr.mxu0 0.0
          %750 = vmatpush2.msra.mxu0 0.0
          %751 = vmatprep.subr.mxu0 0.0
          %752 = vmatpush2.msra.mxu0 0.0
          %753 = vmatprep.subr.mxu0 0.0
          %754 = vmatpush2.msra.mxu0 0.0
          %755 = vmatprep.subr.mxu0 0.0
          %756 = vmatpush2.msra.mxu0 0.0
          %757 = vmatprep.subr.mxu0 0.0
          %758 = vmatpush2.msra.mxu0 0.0
          %759 = vmatprep.subr.mxu0 0.0
          %760 = vmatpush2.msra.mxu0 0.0
          %761 = vmatprep.subr.mxu0 0.0
          %762 = vmatpush2.msra.mxu0 0.0
          %763 = vmatprep.subr.mxu0 0.0
          %764 = vmatpush2.msra.mxu0 0.0
          %765 = vmatprep.subr.mxu0 0.0
          %766 = vmatpush2.msra.mxu0 0.0
          %767 = vmatprep.subr.mxu0 0.0
          %768 = vmatpush2.msra.mxu0 0.0
          %769 = vmatprep.subr.mxu0 0.0
          %770 = vmatpush2.msra.mxu0 0.0
          %771 = vmatprep.mubr.f32.mxu0 0.0
          %772 = vmatmul.mubr.f32.gmra.mxu0 %v705
          %v773 = vpop.f32.mrf.mxu0
          %v774 = vadd.f32 %v701, %v773
          %v775 = vpop.f32.mrf.mxu0
          %776 = vdwg.mxu0
          %778 = vrot.lane.b32.xlu0 %v774, 124
          %v779 = vpop.permute.xlu0 %778
          %781 = vrot.lane.b32.xlu0 %v774, 120
          %v782 = vpop.permute.xlu0 %781
          %784 = vrot.lane.b32.xlu0 %v774, 116
          %v785 = vpop.permute.xlu0 %784
          %787 = vrot.lane.b32.xlu0 %v774, 112
          %v788 = vpop.permute.xlu0 %787
          %790 = vrot.lane.b32.xlu0 %v774, 108
          %v791 = vpop.permute.xlu0 %790
          %793 = vrot.lane.b32.xlu0 %v774, 104
          %v794 = vpop.permute.xlu0 %793
          %796 = vrot.lane.b32.xlu0 %v774, 100
          %v797 = vpop.permute.xlu0 %796
          %v799 = vcombine.low %v774, %v782
          %v801 = vunpack.c.l.s4 1983009808
          %v802 = vunpack.c.0.s8 %v801
          %v803 = vlaneseq
          %v804 = vshrl.u32 %v803, 7
          %v805 = vsub.s32 %v802, %v804
          %v806 = vrot.slane %v799, %v805
          %v807 = vcombine.low %v779, %v785
          %v809 = vunpack.c.l.s4 1983009808
          %v810 = vunpack.c.0.s8 %v809
          %v811 = vlaneseq
          %v812 = vshrl.u32 %v811, 7
          %v813 = vsub.s32 %v810, %v812
          %v814 = vrot.slane %v807, %v813
          %v815 = vcombine.low %v788, %v794
          %v817 = vunpack.c.l.s4 1983009808
          %v818 = vunpack.c.0.s8 %v817
          %v819 = vlaneseq
          %v820 = vshrl.u32 %v819, 7
          %v821 = vsub.s32 %v818, %v820
          %v822 = vrot.slane %v815, %v821
          %v823 = vcombine.low %v791, %v797
          %v825 = vunpack.c.l.s4 1983009808
          %v826 = vunpack.c.0.s8 %v825
          %v827 = vlaneseq
          %v828 = vshrl.u32 %v827, 7
          %v829 = vsub.s32 %v826, %v828
          %v830 = vrot.slane %v823, %v829
          %v831 = vcombine.low %v806, %v814
          %v832 = vcombine.high %v806, %v814
          %v834 = vunpack.c.l.s4 1934713408
          %v835 = vunpack.c.0.s8 %v834
          %v836 = vlaneseq
          %v837 = vshrl.u32 %v836, 7
          %v838 = vsub.s32 %v835, %v837
          %v839 = vrot.slane %v831, %v838
          %v841 = vunpack.c.l.s4 1934713408
          %v842 = vunpack.c.0.s8 %v841
          %v843 = vlaneseq
          %v844 = vshrl.u32 %v843, 7
          %v845 = vsub.s32 %v842, %v844
          %v846 = vrot.slane %v832, %v845
          %v847 = vcombine.low %v822, %v830
          %v848 = vcombine.high %v822, %v830
          %v850 = vunpack.c.l.s4 1934713408
          %v851 = vunpack.c.0.s8 %v850
          %v852 = vlaneseq
          %v853 = vshrl.u32 %v852, 7
          %v854 = vsub.s32 %v851, %v853
          %v855 = vrot.slane %v847, %v854
          %v857 = vunpack.c.l.s4 1934713408
          %v858 = vunpack.c.0.s8 %v857
          %v859 = vlaneseq
          %v860 = vshrl.u32 %v859, 7
          %v861 = vsub.s32 %v858, %v860
          %v862 = vrot.slane %v848, %v861
          %v863 = vcombine.low %v839, %v855
          %v864 = vcombine.high %v839, %v855
          %v865 = vcombine.low %v846, %v862
          %v866 = vcombine.high %v846, %v862
          %vm867 = vcmask 31744
          %868 = vst.msk [vmem:[#allocation2] sm:$0xff] %vm867, %v863
          %869 = vst.msk [vmem:[#allocation2 + $0x8] sm:$0xff] %vm867, %v864
          %870 = vst.msk [vmem:[#allocation2 + $0x10] sm:$0xff] %vm867, %v865
          %871 = vst.msk [vmem:[#allocation2 + $0x18] sm:$0xff] %vm867, %v866
          %v872 = vld [vmem:[%s10] sm:$0xff]
          %v873 = vld [vmem:[%s10 + $0x8] sm:$0xff]
          %v874 = vld [vmem:[%s10 + $0x10] sm:$0xff]
          %v875 = vld [vmem:[%s10 + $0x18] sm:$0xff]
          %v876 = vld [vmem:[%s10 + $0x20] sm:$0xff]
          %v877 = vld [vmem:[%s10 + $0x28] sm:$0xff]
          %v878 = vld [vmem:[%s10 + $0x30] sm:$0xff]
          %v879 = vld [vmem:[%s10 + $0x38] sm:$0xff]
          %v880 = vld [vmem:[%s11] sm:$0x1]
          %v882 = vlaneseq
          %v883 = vshrl.u32 %v882, 7
          %v884 = vsub.s32 0, %v883
          %v885 = vrot.slane %v880, %v884
          %v888 = vsel %vm703, %v687, 0
          %890 = vmatprep.subr.mxu0 0.0
          %891 = vmatpush1.msra.mxu0 0.0
          %892 = vmatprep.subr.mxu0 0.0
          %893 = vmatpush1.msra.mxu0 0.0
          %894 = vmatprep.subr.mxu0 0.0
          %895 = vmatpush1.msra.mxu0 0.0
          %896 = vmatprep.subr.mxu0 0.0
          %897 = vmatpush1.msra.mxu0 0.0
          %898 = vmatprep.subr.mxu0 0.0
          %899 = vmatpush1.msra.mxu0 0.0
          %900 = vmatprep.subr.mxu0 0.0
          %901 = vmatpush1.msra.mxu0 0.0
          %902 = vmatprep.subr.mxu0 0.0
          %903 = vmatpush1.msra.mxu0 0.0
          %904 = vmatprep.subr.mxu0 0.0
          %905 = vmatpush1.msra.mxu0 0.0
          %906 = vmatprep.subr.mxu0 0.0
          %907 = vmatpush1.msra.mxu0 %v879
          %908 = vmatprep.subr.mxu0 0.0
          %909 = vmatpush1.msra.mxu0 %v878
          %910 = vmatprep.subr.mxu0 0.0
          %911 = vmatpush1.msra.mxu0 %v877
          %912 = vmatprep.subr.mxu0 0.0
          %913 = vmatpush1.msra.mxu0 %v876
          %914 = vmatprep.subr.mxu0 0.0
          %915 = vmatpush1.msra.mxu0 %v875
          %916 = vmatprep.subr.mxu0 0.0
          %917 = vmatpush1.msra.mxu0 %v874
          %918 = vmatprep.subr.mxu0 0.0
          %919 = vmatpush1.msra.mxu0 %v873
          %920 = vmatprep.subr.mxu0 0.0
          %921 = vmatpush1.msra.mxu0 %v872
          %922 = vmatprep.subr.mxu0 0.0
          %923 = vmatpush2.msra.mxu0 0.0
          %924 = vmatprep.subr.mxu0 0.0
          %925 = vmatpush2.msra.mxu0 0.0
          %926 = vmatprep.subr.mxu0 0.0
          %927 = vmatpush2.msra.mxu0 0.0
          %928 = vmatprep.subr.mxu0 0.0
          %929 = vmatpush2.msra.mxu0 0.0
          %930 = vmatprep.subr.mxu0 0.0
          %931 = vmatpush2.msra.mxu0 0.0
          %932 = vmatprep.subr.mxu0 0.0
          %933 = vmatpush2.msra.mxu0 0.0
          %934 = vmatprep.subr.mxu0 0.0
          %935 = vmatpush2.msra.mxu0 0.0
          %936 = vmatprep.subr.mxu0 0.0
          %937 = vmatpush2.msra.mxu0 0.0
          %938 = vmatprep.subr.mxu0 0.0
          %939 = vmatpush2.msra.mxu0 0.0
          %940 = vmatprep.subr.mxu0 0.0
          %941 = vmatpush2.msra.mxu0 0.0
          %942 = vmatprep.subr.mxu0 0.0
          %943 = vmatpush2.msra.mxu0 0.0
          %944 = vmatprep.subr.mxu0 0.0
          %945 = vmatpush2.msra.mxu0 0.0
          %946 = vmatprep.subr.mxu0 0.0
          %947 = vmatpush2.msra.mxu0 0.0
          %948 = vmatprep.subr.mxu0 0.0
          %949 = vmatpush2.msra.mxu0 0.0
          %950 = vmatprep.subr.mxu0 0.0
          %951 = vmatpush2.msra.mxu0 0.0
          %952 = vmatprep.subr.mxu0 0.0
          %953 = vmatpush2.msra.mxu0 0.0
          %954 = vmatprep.mubr.f32.mxu0 0.0
          %955 = vmatmul.mubr.f32.gmra.mxu0 %v888
          %v956 = vpop.f32.mrf.mxu0
          %v957 = vadd.f32 %v885, %v956
          %v958 = vpop.f32.mrf.mxu0
          %959 = vdwg.mxu0
          %v960 = vlaneseq
          %v961 = vshrl.u32 %v960, 7
          %v962 = vsub.s32 0, %v961
          %v963 = vrot.slane %v957, %v962
          %965 = vbcast.lane.b32.xlu0 %v963, 256
          %v966 = vpop.permute.xlu0 %965
          %v967 = vlaneseq
          %v968 = vshrl.u32 %v967, 7
          %v969 = vsub.s32 1, %v968
          %v970 = vrot.slane %v957, %v969
          %972 = vbcast.lane.b32.xlu0 %v970, 256
          %v973 = vpop.permute.xlu0 %972
          %v974 = vlaneseq
          %v975 = vshrl.u32 %v974, 7
          %v976 = vsub.s32 2, %v975
          %v977 = vrot.slane %v957, %v976
          %979 = vbcast.lane.b32.xlu0 %v977, 256
          %v980 = vpop.permute.xlu0 %979
          %v981 = vlaneseq
          %v982 = vshrl.u32 %v981, 7
          %v983 = vsub.s32 3, %v982
          %v984 = vrot.slane %v957, %v983
          %986 = vbcast.lane.b32.xlu0 %v984, 256
          %v987 = vpop.permute.xlu0 %986
          %vm988 = vcmask 7168
          %989 = vst.msk [vmem:[#allocation3] sm:$0xff] %vm988, %v966
          %990 = vst.msk [vmem:[#allocation3 + $0x8] sm:$0xff] %vm988, %v973
          %991 = vst.msk [vmem:[#allocation3 + $0x10] sm:$0xff] %vm988, %v980
          %992 = vst.msk [vmem:[#allocation3 + $0x18] sm:$0xff] %vm988, %v987
        $region80: #{tpu_custom_call.1} parent=75 // pred_fallthru
          _
        %v993 = vld [vmem:[%s507] sm:$0xff]
        %v994 = vld [vmem:[%s2] sm:$0xf]
        %996 = vset.pattern.permute.xlu0 0
        %997 = vperm.xlu0 %996, %v994
        %v998 = vpop.permute.xlu0 %997
        %v1000 = vunpack.c.l.s4 839922192
        %v1001 = vunpack.c.0.s8 %v1000
        %v1002 = vlaneseq
        %v1003 = vshrl.u32 %v1002, 7
        %v1004 = vsub.s32 %v1001, %v1003
        %v1005 = vrot.slane %v998, %v1004
        %v1007 = vmul.f32 %v993, %v1005
        %v1008 = vld [vmem:[%s3] sm:$0xf]
        %1010 = vset.pattern.permute.xlu0 0
        %1011 = vperm.xlu0 %1010, %v1008
        %v1012 = vpop.permute.xlu0 %1011
        %v1014 = vunpack.c.l.s4 839922192
        %v1015 = vunpack.c.0.s8 %v1014
        %v1016 = vlaneseq
        %v1017 = vshrl.u32 %v1016, 7
        %v1018 = vsub.s32 %v1015, %v1017
        %v1019 = vrot.slane %v1012, %v1018
        %v1021 = vadd.f32 %v1007, %v1019
        %v1022 = vld [vmem:[%s12] sm:$0xff]
        %v1023 = vld [vmem:[%s13] sm:$0xff]
        %1025 = vset.pattern.permute.xlu0 0
        %1026 = vperm.xlu0 %1025, %v1023
        %v1027 = vpop.permute.xlu0 %1026
        %v1030 = vcombine.high %v993, %v993
        %vm1031 = vcmask 31744
        %v1033 = vsel %vm1031, %v1022, 0
        %vm1035 = vcmask 1043456
        %v1036 = vsel %vm1035, %v993, 0
        %v1038 = vsel %vm1035, %v1030, 0
        %1040 = vmatprep.subr.mxu0 0.0
        %1041 = vmatpush1.msra.mxu0 0.0
        %1042 = vmatprep.subr.mxu0 0.0
        %1043 = vmatpush1.msra.mxu0 0.0
        %1044 = vmatprep.subr.mxu0 0.0
        %1045 = vmatpush1.msra.mxu0 0.0
        %1046 = vmatprep.subr.mxu0 0.0
        %1047 = vmatpush1.msra.mxu0 0.0
        %1048 = vmatprep.subr.mxu0 0.0
        %1049 = vmatpush1.msra.mxu0 0.0
        %1050 = vmatprep.subr.mxu0 0.0
        %1051 = vmatpush1.msra.mxu0 0.0
        %1052 = vmatprep.subr.mxu0 0.0
        %1053 = vmatpush1.msra.mxu0 0.0
        %1054 = vmatprep.subr.mxu0 0.0
        %1055 = vmatpush1.msra.mxu0 0.0
        %1056 = vmatprep.subr.mxu0 0.0
        %1057 = vmatpush1.msra.mxu0 0.0
        %1058 = vmatprep.subr.mxu0 0.0
        %1059 = vmatpush1.msra.mxu0 0.0
        %1060 = vmatprep.subr.mxu0 0.0
        %1061 = vmatpush1.msra.mxu0 0.0
        %1062 = vmatprep.subr.mxu0 0.0
        %1063 = vmatpush1.msra.mxu0 0.0
        %1064 = vmatprep.subr.mxu0 0.0
        %1065 = vmatpush1.msra.mxu0 0.0
        %1066 = vmatprep.subr.mxu0 0.0
        %1067 = vmatpush1.msra.mxu0 0.0
        %1068 = vmatprep.subr.mxu0 0.0
        %1069 = vmatpush1.msra.mxu0 0.0
        %1070 = vmatprep.subr.mxu0 %v1038
        %1071 = vmatpush1.msra.mxu0 %v1036
        %1072 = vmatprep.subr.mxu0 0.0
        %1073 = vmatpush2.msra.mxu0 0.0
        %1074 = vmatprep.subr.mxu0 0.0
        %1075 = vmatpush2.msra.mxu0 0.0
        %1076 = vmatprep.subr.mxu0 0.0
        %1077 = vmatpush2.msra.mxu0 0.0
        %1078 = vmatprep.subr.mxu0 0.0
        %1079 = vmatpush2.msra.mxu0 0.0
        %1080 = vmatprep.subr.mxu0 0.0
        %1081 = vmatpush2.msra.mxu0 0.0
        %1082 = vmatprep.subr.mxu0 0.0
        %1083 = vmatpush2.msra.mxu0 0.0
        %1084 = vmatprep.subr.mxu0 0.0
        %1085 = vmatpush2.msra.mxu0 0.0
        %1086 = vmatprep.subr.mxu0 0.0
        %1087 = vmatpush2.msra.mxu0 0.0
        %1088 = vmatprep.subr.mxu0 0.0
        %1089 = vmatpush2.msra.mxu0 0.0
        %1090 = vmatprep.subr.mxu0 0.0
        %1091 = vmatpush2.msra.mxu0 0.0
        %1092 = vmatprep.subr.mxu0 0.0
        %1093 = vmatpush2.msra.mxu0 0.0
        %1094 = vmatprep.subr.mxu0 0.0
        %1095 = vmatpush2.msra.mxu0 0.0
        %1096 = vmatprep.subr.mxu0 0.0
        %1097 = vmatpush2.msra.mxu0 0.0
        %1098 = vmatprep.subr.mxu0 0.0
        %1099 = vmatpush2.msra.mxu0 0.0
        %1100 = vmatprep.subr.mxu0 0.0
        %1101 = vmatpush2.msra.mxu0 0.0
        %1102 = vmatprep.subr.mxu0 0.0
        %1103 = vmatpush2.msra.mxu0 0.0
        %1104 = vmatprep.mubr.f32.mxu0 0.0
        %1105 = vmatmul.mubr.f32.gmra.mxu0 %v1033
        %v1106 = vpop.f32.mrf.mxu0
        %v1107 = vadd.f32 %v1027, %v1106
        %v1108 = vpop.f32.mrf.mxu0
        %v1109 = vadd.f32 %v1027, %v1108
        %1110 = vdwg.mxu0
        %s1111 = smul.u32 %s33, 2
        %s1112 = smul.u32 %s1111, 8
        %s1113 = scalar_lea.vmem [#allocation2], %s1112
        %v1114 = vld [vmem:[%s1113] sm:$0xff]
        %s1115 = scalar_lea.vmem [#allocation3], %s1112
        %v1116 = vld [vmem:[%s1115] sm:$0xff]
        %1118 = vset.pattern.permute.xlu0 0
        %1119 = vperm.xlu0 %1118, %v1116
        %v1120 = vpop.permute.xlu0 %1119
        %v1123 = vsel %vm1031, %v1114, 0
        %v1126 = vsel %vm1035, %v1021, 0
        %1128 = vmatprep.subr.mxu0 0.0
        %1129 = vmatpush1.msra.mxu0 0.0
        %1130 = vmatprep.subr.mxu0 0.0
        %1131 = vmatpush1.msra.mxu0 0.0
        %1132 = vmatprep.subr.mxu0 0.0
        %1133 = vmatpush1.msra.mxu0 0.0
        %1134 = vmatprep.subr.mxu0 0.0
        %1135 = vmatpush1.msra.mxu0 0.0
        %1136 = vmatprep.subr.mxu0 0.0
        %1137 = vmatpush1.msra.mxu0 0.0
        %1138 = vmatprep.subr.mxu0 0.0
        %1139 = vmatpush1.msra.mxu0 0.0
        %1140 = vmatprep.subr.mxu0 0.0
        %1141 = vmatpush1.msra.mxu0 0.0
        %1142 = vmatprep.subr.mxu0 0.0
        %1143 = vmatpush1.msra.mxu0 0.0
        %1144 = vmatprep.subr.mxu0 0.0
        %1145 = vmatpush1.msra.mxu0 0.0
        %1146 = vmatprep.subr.mxu0 0.0
        %1147 = vmatpush1.msra.mxu0 0.0
        %1148 = vmatprep.subr.mxu0 0.0
        %1149 = vmatpush1.msra.mxu0 0.0
        %1150 = vmatprep.subr.mxu0 0.0
        %1151 = vmatpush1.msra.mxu0 0.0
        %1152 = vmatprep.subr.mxu0 0.0
        %1153 = vmatpush1.msra.mxu0 0.0
        %1154 = vmatprep.subr.mxu0 0.0
        %1155 = vmatpush1.msra.mxu0 0.0
        %1156 = vmatprep.subr.mxu0 0.0
        %1157 = vmatpush1.msra.mxu0 0.0
        %1158 = vmatprep.subr.mxu0 0.0
        %1159 = vmatpush1.msra.mxu0 %v1126
        %1160 = vmatprep.subr.mxu0 0.0
        %1161 = vmatpush2.msra.mxu0 0.0
        %1162 = vmatprep.subr.mxu0 0.0
        %1163 = vmatpush2.msra.mxu0 0.0
        %1164 = vmatprep.subr.mxu0 0.0
        %1165 = vmatpush2.msra.mxu0 0.0
        %1166 = vmatprep.subr.mxu0 0.0
        %1167 = vmatpush2.msra.mxu0 0.0
        %1168 = vmatprep.subr.mxu0 0.0
        %1169 = vmatpush2.msra.mxu0 0.0
        %1170 = vmatprep.subr.mxu0 0.0
        %1171 = vmatpush2.msra.mxu0 0.0
        %1172 = vmatprep.subr.mxu0 0.0
        %1173 = vmatpush2.msra.mxu0 0.0
        %1174 = vmatprep.subr.mxu0 0.0
        %1175 = vmatpush2.msra.mxu0 0.0
        %1176 = vmatprep.subr.mxu0 0.0
        %1177 = vmatpush2.msra.mxu0 0.0
        %1178 = vmatprep.subr.mxu0 0.0
        %1179 = vmatpush2.msra.mxu0 0.0
        %1180 = vmatprep.subr.mxu0 0.0
        %1181 = vmatpush2.msra.mxu0 0.0
        %1182 = vmatprep.subr.mxu0 0.0
        %1183 = vmatpush2.msra.mxu0 0.0
        %1184 = vmatprep.subr.mxu0 0.0
        %1185 = vmatpush2.msra.mxu0 0.0
        %1186 = vmatprep.subr.mxu0 0.0
        %1187 = vmatpush2.msra.mxu0 0.0
        %1188 = vmatprep.subr.mxu0 0.0
        %1189 = vmatpush2.msra.mxu0 0.0
        %1190 = vmatprep.subr.mxu0 0.0
        %1191 = vmatpush2.msra.mxu0 0.0
        %1192 = vmatprep.mubr.f32.mxu0 0.0
        %1193 = vmatmul.mubr.f32.gmra.mxu0 %v1123
        %v1194 = vpop.f32.mrf.mxu0
        %v1195 = vadd.f32 %v1120, %v1194
        %v1196 = vpop.f32.mrf.mxu0
        %1197 = vdwg.mxu0
        %v1198 = vmax.f32 %v1195, 0.0
        %v1199 = vadd.f32 %v1107, %v1198
        %1200 = vst [vmem:[%s498] sm:$0xff] %v1199
        %s1201 = sadd.s32 %s1111, 1
        %s1202 = smul.u32 %s1201, 8
        %s1203 = scalar_lea.vmem [#allocation2], %s1202
        %v1204 = vld [vmem:[%s1203] sm:$0xff]
        %s1205 = scalar_lea.vmem [#allocation3], %s1202
        %v1206 = vld [vmem:[%s1205] sm:$0xff]
        %1208 = vset.pattern.permute.xlu0 0
        %1209 = vperm.xlu0 %1208, %v1206
        %v1210 = vpop.permute.xlu0 %1209
        %v1212 = vcombine.high %v1021, %v1021
        %v1214 = vsel %vm1031, %v1204, 0
        %v1216 = vsel %vm1035, %v1212, 0
        %1218 = vmatprep.subr.mxu0 0.0
        %1219 = vmatpush1.msra.mxu0 0.0
        %1220 = vmatprep.subr.mxu0 0.0
        %1221 = vmatpush1.msra.mxu0 0.0
        %1222 = vmatprep.subr.mxu0 0.0
        %1223 = vmatpush1.msra.mxu0 0.0
        %1224 = vmatprep.subr.mxu0 0.0
        %1225 = vmatpush1.msra.mxu0 0.0
        %1226 = vmatprep.subr.mxu0 0.0
        %1227 = vmatpush1.msra.mxu0 0.0
        %1228 = vmatprep.subr.mxu0 0.0
        %1229 = vmatpush1.msra.mxu0 0.0
        %1230 = vmatprep.subr.mxu0 0.0
        %1231 = vmatpush1.msra.mxu0 0.0
        %1232 = vmatprep.subr.mxu0 0.0
        %1233 = vmatpush1.msra.mxu0 0.0
        %1234 = vmatprep.subr.mxu0 0.0
        %1235 = vmatpush1.msra.mxu0 0.0
        %1236 = vmatprep.subr.mxu0 0.0
        %1237 = vmatpush1.msra.mxu0 0.0
        %1238 = vmatprep.subr.mxu0 0.0
        %1239 = vmatpush1.msra.mxu0 0.0
        %1240 = vmatprep.subr.mxu0 0.0
        %1241 = vmatpush1.msra.mxu0 0.0
        %1242 = vmatprep.subr.mxu0 0.0
        %1243 = vmatpush1.msra.mxu0 0.0
        %1244 = vmatprep.subr.mxu0 0.0
        %1245 = vmatpush1.msra.mxu0 0.0
        %1246 = vmatprep.subr.mxu0 0.0
        %1247 = vmatpush1.msra.mxu0 0.0
        %1248 = vmatprep.subr.mxu0 0.0
        %1249 = vmatpush1.msra.mxu0 %v1216
        %1250 = vmatprep.subr.mxu0 0.0
        %1251 = vmatpush2.msra.mxu0 0.0
        %1252 = vmatprep.subr.mxu0 0.0
        %1253 = vmatpush2.msra.mxu0 0.0
        %1254 = vmatprep.subr.mxu0 0.0
        %1255 = vmatpush2.msra.mxu0 0.0
        %1256 = vmatprep.subr.mxu0 0.0
        %1257 = vmatpush2.msra.mxu0 0.0
        %1258 = vmatprep.subr.mxu0 0.0
        %1259 = vmatpush2.msra.mxu0 0.0
        %1260 = vmatprep.subr.mxu0 0.0
        %1261 = vmatpush2.msra.mxu0 0.0
        %1262 = vmatprep.subr.mxu0 0.0
        %1263 = vmatpush2.msra.mxu0 0.0
        %1264 = vmatprep.subr.mxu0 0.0
        %1265 = vmatpush2.msra.mxu0 0.0
        %1266 = vmatprep.subr.mxu0 0.0
        %1267 = vmatpush2.msra.mxu0 0.0
        %1268 = vmatprep.subr.mxu0 0.0
        %1269 = vmatpush2.msra.mxu0 0.0
        %1270 = vmatprep.subr.mxu0 0.0
        %1271 = vmatpush2.msra.mxu0 0.0
        %1272 = vmatprep.subr.mxu0 0.0
        %1273 = vmatpush2.msra.mxu0 0.0
        %1274 = vmatprep.subr.mxu0 0.0
        %1275 = vmatpush2.msra.mxu0 0.0
        %1276 = vmatprep.subr.mxu0 0.0
        %1277 = vmatpush2.msra.mxu0 0.0
        %1278 = vmatprep.subr.mxu0 0.0
        %1279 = vmatpush2.msra.mxu0 0.0
        %1280 = vmatprep.subr.mxu0 0.0
        %1281 = vmatpush2.msra.mxu0 0.0
        %1282 = vmatprep.mubr.f32.mxu0 0.0
        %1283 = vmatmul.mubr.f32.gmra.mxu0 %v1214
        %v1284 = vpop.f32.mrf.mxu0
        %v1285 = vadd.f32 %v1210, %v1284
        %v1286 = vpop.f32.mrf.mxu0
        %1287 = vdwg.mxu0
        %v1288 = vmax.f32 %v1285, 0.0
        %v1289 = vadd.f32 %v1109, %v1288
        %1290 = vst [vmem:[%s498 + $0x8] sm:$0xff] %v1289
        %s1291 = sand.u32 %s356, 1
        %s1292 = scalar_lea.sflag [#allocation5], %s1291
        %s1293 = sand.u32 %s356, 1
        %s1294 = smul.addr %s1293, 16
        %s1295 = scalar_lea.vmem [#allocation4], %s1294
        // Predicated region
        $region81: #{tpu_custom_call.1} parent=75 // pred_check
          %p1296 = pneg %p366
        $region82: #{tpu_custom_call.1} parent=75 // pred_check_branch
          %1298 = sbr.rel (%p1296) target = $region84
        $region83: #{tpu_custom_call.1} parent=75 // pred_region
          %s1299 = smul.u32 2, %s33
          %s1301 = ssub.s32 256, 256
          %1302 = vsyncadd %s1292, %s1301
          %s1303 = smul.addr %s32, 4
          %s1304 = sadd.s32 %s1299, %s1303
          %s1305 = smul.addr %s1304, 128
          %s1306 = scalar_lea.hbm %s14, %s1305
          %s1308 = sshll.u32 %s1295, 4
          %s1309 = int_to_ptr.vmem [resolvable:$true] %s1308
          %1311 = dma.vmem_to_hbm [thread:$0]  %s1309, 256, %s1306, %s1292
        $region84: #{tpu_custom_call.1} parent=75 // pred_fallthru
          _
      $region76: #{tpu_custom_call.1} parent=5 // pred_fallthru
        _
      %p1312 = scmp.le.s32.totalorder 2, %s23
      // Predicated region
      $region85: #{tpu_custom_call.1} parent=5 // pred_check
        %p1313 = pneg %p1312
      $region86: #{tpu_custom_call.1} parent=5 // pred_check_branch
        %1315 = sbr.rel (%p1313) target = $region88
      $region87: #{tpu_custom_call.1} parent=5 // pred_region
        %s1316 = ssub.s32 %s23, 2
        // Predicated region
        $region89: #{tpu_custom_call.1} parent=87 // pred_check
          %p1317 = pneg %p372
        $region90: #{tpu_custom_call.1} parent=87 // pred_check_branch
          %1319 = sbr.rel (%p1317) target = $region92
        $region91: #{tpu_custom_call.1} parent=87 // pred_region
          %s1320 = sand.u32 %s357, 1
          %s1321 = scalar_lea.sflag [#allocation5], %s1320
          %s1322 = sand.u32 %s357, 1
          %s1323 = smul.addr %s1322, 16
          %s1324 = scalar_lea.vmem [#allocation4], %s1323
          %1325 = dma.done %s1321, 256
        $region92: #{tpu_custom_call.1} parent=87 // pred_fallthru
          _
      $region88: #{tpu_custom_call.1} parent=5 // pred_fallthru
        _
    $region6: #{tpu_custom_call.1} parent=1 // loop_footer
      %s27 = sadd.s32 1, %s23
    $region7: #{tpu_custom_call.1} parent=1 // loop_footer_branch
      %22 = sbr.rel target = $region3
    $region8: #{tpu_custom_call.1} parent=1 // loop_exit
      _
    %1326 = vsyncpa [#allocation5], 1
    %s1327 = scalar_lea.sflag [#allocation5], 1
    %1328 = vsyncpa %s1327, 1

</llo_original>
